<compile_context>
chip_gen: v6e
topology: v6e:2x2x1
jax: 0.10.0
libtpu: 0.0.40
codegen_flags: <defaults>
</compile_context>

<pallas_src>
import jax
import jax.numpy as jnp
from jax.experimental import pallas as pl
from jax.experimental.pallas import tpu as pltpu


def head_score_kernel(x_ref, w1_ref, b1_ref, w2_ref, b2_ref, o_ref):
    # First linear layer (bf16 inputs, f32 MXU accumulator) + bias + GELU (f32).
    h = jnp.dot(x_ref[...], w1_ref[...], preferred_element_type=jnp.float32)
    h = h + b1_ref[...]
    h = jax.nn.gelu(h, approximate=True)  # tanh GELU -> transcendental on EUP slot
    # Second linear layer -> lane-dense padded (TILE_N, 128) score block.
    s = jnp.dot(h, w2_ref[...], preferred_element_type=jnp.float32)
    s = s + b2_ref[...]
    o_ref[...] = s.astype(o_ref.dtype)


def head_forward(x, w1, b1, w2, b2, *, tile_n=512):
    """Pallas wrapper: score = GELU(x @ w1 + b1) @ w2 + b2, returns (n, out_dim)."""
    n, d = x.shape
    h = w1.shape[1]
    out_dim = w2.shape[1]
    out_dtype = x.dtype

    # --- bf16 feed for the HBM-bound first matmul (accumulate in f32) ---
    x_bf = x.astype(jnp.bfloat16)
    w1_bf = w1.astype(jnp.bfloat16)
    b1_f = b1.reshape(1, h).astype(jnp.float32)

    # --- lane-dense second projection: pad out_dim -> multiple of 128 ---
    out_pad = max(128, ((out_dim + 127) // 128) * 128)
    w2_p = jnp.zeros((h, out_pad), jnp.float32).at[:, :out_dim].set(
        w2.astype(jnp.float32))
    b2_p = jnp.zeros((1, out_pad), jnp.float32).at[:, :out_dim].set(
        b2.reshape(1, out_dim).astype(jnp.float32))

    # --- row-axis tiling; pad ragged tail with zero rows (sliced off below) ---
    tile_n = min(tile_n, ((n + 15) // 16) * 16)   # multiple of 16 (bf16 sublanes)
    n_pad = ((n + tile_n - 1) // tile_n) * tile_n
    if n_pad != n:
        x_bf = jnp.pad(x_bf, ((0, n_pad - n), (0, 0)))
    grid = (n_pad // tile_n,)

    cost = pl.CostEstimate(
        flops=2 * n_pad * d * h + 2 * n_pad * h * out_pad,
        transcendentals=n_pad * h,
        bytes_accessed=(n_pad * d * 2 + d * h * 2 + h * 4
                        + h * out_pad * 4 + out_pad * 4
                        + n_pad * out_pad * 4),
    )

    out = pl.pallas_call(
        head_score_kernel,
        out_shape=jax.ShapeDtypeStruct((n_pad, out_pad), out_dtype),
        grid_spec=pltpu.PrefetchScalarGridSpec(
            num_scalar_prefetch=0,
            grid=grid,
            in_specs=[
                # X streams row tiles; weights/biases stay resident (constant index).
                pl.BlockSpec((tile_n, d), lambda i: (i, 0)),
                pl.BlockSpec((d, h), lambda i: (0, 0)),
                pl.BlockSpec((1, h), lambda i: (0, 0)),
                pl.BlockSpec((h, out_pad), lambda i: (0, 0)),
                pl.BlockSpec((1, out_pad), lambda i: (0, 0)),
            ],
            out_specs=pl.BlockSpec((tile_n, out_pad), lambda i: (i, 0)),
        ),
        compiler_params=pltpu.CompilerParams(
            dimension_semantics=("parallel",),  # row tiles shard across TCs on v7x
        ),
        cost_estimate=cost,
    )(x_bf, w1_bf, b1_f, w2_p, b2_p)

    return out[:n, :out_dim]


def reference_forward(x, w1, b1, w2, b2):
    # Same math as the kernel (bf16-fed first matmul, f32 accumulation, tanh GELU).
    h = jnp.dot(x.astype(jnp.bfloat16), w1.astype(jnp.bfloat16),
                preferred_element_type=jnp.float32) + b1.reshape(1, -1)
    h = jax.nn.gelu(h, approximate=True)
    return jnp.dot(h, w2.astype(jnp.float32),
                   preferred_element_type=jnp.float32) + b2.reshape(1, -1)


if __name__ == "__main__":
    key = jax.random.PRNGKey(0)
    k_x, k_w1, k_b1, k_w2, k_b2 = jax.random.split(key, 5)

    num_atoms = 1000    # deliberately not a multiple of the tile -> exercises padding
    feat_dim = 128      # per-atom representation width
    hidden = 128        # head hidden width
    out_dim = 3         # score matches positions ("pos") shape: (num_atoms, 3)

    x = jax.random.normal(k_x, (num_atoms, feat_dim), dtype=jnp.float32)
    w1 = jax.random.normal(k_w1, (feat_dim, hidden), dtype=jnp.float32) * 0.05
    b1 = jax.random.normal(k_b1, (1, hidden), dtype=jnp.float32) * 0.01
    w2 = jax.random.normal(k_w2, (hidden, out_dim), dtype=jnp.float32) * 0.05
    b2 = jax.random.normal(k_b2, (1, out_dim), dtype=jnp.float32) * 0.01

    out = head_forward(x, w1, b1, w2, b2)
    out = jax.block_until_ready(out)

    ref = reference_forward(x, w1, b1, w2, b2)
    assert out.shape == (num_atoms, out_dim)
    assert jnp.allclose(out, ref, atol=1e-2, rtol=1e-2)

    print("KERNEL_OK")
</pallas_src>

<mosaic_0001>
module attributes {stable_mosaic.version = 11 : i64} {
  func.func @head_score_kernel(%arg0: i32, %arg1: memref<512x128xbf16, #tpu.memory_space<vmem>>, %arg2: memref<128x128xbf16, #tpu.memory_space<vmem>>, %arg3: memref<1x128xf32, #tpu.memory_space<vmem>>, %arg4: memref<128x128xf32, #tpu.memory_space<vmem>>, %arg5: memref<1x128xf32, #tpu.memory_space<vmem>>, %arg6: memref<512x128xf32, #tpu.memory_space<vmem>>) attributes {dimension_semantics = [#tpu.dimension_semantics<parallel>], iteration_bounds = array<i64: 2>, scalar_prefetch = 0 : i64, scratch_operands = 0 : i64, tpu.core_type = #tpu.core_type<tc>, window_params = [{transform_indices = @transform_0, window_bounds = array<i64: 512, 128>}, {pipeline_mode = #tpu.pipeline_mode<synchronous>, transform_indices = @transform_1, window_bounds = array<i64: 128, 128>}, {pipeline_mode = #tpu.pipeline_mode<synchronous>, transform_indices = @transform_2, window_bounds = array<i64: 1, 128>}, {pipeline_mode = #tpu.pipeline_mode<synchronous>, transform_indices = @transform_3, window_bounds = array<i64: 128, 128>}, {pipeline_mode = #tpu.pipeline_mode<synchronous>, transform_indices = @transform_4, window_bounds = array<i64: 1, 128>}, {transform_indices = @transform_5, window_bounds = array<i64: 512, 128>}]} {
    %c0 = arith.constant 0 : index
    %c0_0 = arith.constant 0 : index
    %0 = vector.load %arg1[%c0, %c0_0] : memref<512x128xbf16, #tpu.memory_space<vmem>>, vector<512x128xbf16>
    %c0_1 = arith.constant 0 : index
    %c0_2 = arith.constant 0 : index
    %1 = vector.load %arg2[%c0_1, %c0_2] : memref<128x128xbf16, #tpu.memory_space<vmem>>, vector<128x128xbf16>
    %cst = arith.constant dense<0.000000e+00> : vector<512x128xf32>
    %2 = tpu.matmul %0, %1, %cst {dimension_numbers = #tpu.dot_dimension_numbers<[1], [0], [0], [1], [0, 0, 1, 1], [], []>} : vector<512x128xbf16>, vector<128x128xbf16>, vector<512x128xf32> -> vector<512x128xf32>
    %c0_3 = arith.constant 0 : index
    %c0_4 = arith.constant 0 : index
    %3 = vector.load %arg3[%c0_3, %c0_4] : memref<1x128xf32, #tpu.memory_space<vmem>>, vector<1x128xf32>
    %4 = vector.broadcast %3 : vector<1x128xf32> to vector<512x128xf32>
    %5 = arith.addf %2, %4 : vector<512x128xf32>
    %6 = arith.mulf %5, %5 : vector<512x128xf32>
    %7 = arith.mulf %5, %6 : vector<512x128xf32>
    %cst_5 = arith.constant 4.471500e-02 : f32
    %8 = vector.broadcast %cst_5 : f32 to vector<512x128xf32>
    %9 = arith.mulf %8, %7 : vector<512x128xf32>
    %10 = arith.addf %5, %9 : vector<512x128xf32>
    %cst_6 = arith.constant 0.797884583 : f32
    %11 = vector.broadcast %cst_6 : f32 to vector<512x128xf32>
    %12 = arith.mulf %11, %10 : vector<512x128xf32>
    %13 = math.tanh %12 : vector<512x128xf32>
    %cst_7 = arith.constant 1.000000e+00 : f32
    %14 = vector.broadcast %cst_7 : f32 to vector<512x128xf32>
    %15 = arith.addf %14, %13 : vector<512x128xf32>
    %cst_8 = arith.constant 5.000000e-01 : f32
    %16 = vector.broadcast %cst_8 : f32 to vector<512x128xf32>
    %17 = arith.mulf %16, %15 : vector<512x128xf32>
    %18 = arith.mulf %5, %17 : vector<512x128xf32>
    %c0_9 = arith.constant 0 : index
    %c0_10 = arith.constant 0 : index
    %19 = vector.load %arg4[%c0_9, %c0_10] : memref<128x128xf32, #tpu.memory_space<vmem>>, vector<128x128xf32>
    %cst_11 = arith.constant dense<0.000000e+00> : vector<512x128xf32>
    %20 = tpu.matmul %18, %19, %cst_11 {dimension_numbers = #tpu.dot_dimension_numbers<[1], [0], [0], [1], [0, 0, 1, 1], [], []>} : vector<512x128xf32>, vector<128x128xf32>, vector<512x128xf32> -> vector<512x128xf32>
    %c0_12 = arith.constant 0 : index
    %c0_13 = arith.constant 0 : index
    %21 = vector.load %arg5[%c0_12, %c0_13] : memref<1x128xf32, #tpu.memory_space<vmem>>, vector<1x128xf32>
    %22 = vector.broadcast %21 : vector<1x128xf32> to vector<512x128xf32>
    %23 = arith.addf %20, %22 : vector<512x128xf32>
    %c0_14 = arith.constant 0 : index
    %c0_15 = arith.constant 0 : index
    %24 = vector.load %arg6[%c0_14, %c0_15] : memref<512x128xf32, #tpu.memory_space<vmem>>, vector<512x128xf32>
    tpu.vector_store %arg6[%c0_14, %c0_15], %23 {strides = array<i32>} : memref<512x128xf32, #tpu.memory_space<vmem>>, vector<512x128xf32>,
    return
  }
  func.func @transform_0(%arg0: i32) -> (i32, i32) {
    %c0_i32 = arith.constant 0 : i32
    %c0_i32_0 = arith.constant 0 : i32
    return %arg0, %c0_i32 : i32, i32
  }
  func.func @transform_1(%arg0: i32) -> (i32, i32) {
    %c0_i32 = arith.constant 0 : i32
    %c0_i32_0 = arith.constant 0 : i32
    %c0_i32_1 = arith.constant 0 : i32
    return %c0_i32, %c0_i32_0 : i32, i32
  }
  func.func @transform_2(%arg0: i32) -> (i32, i32) {
    %c0_i32 = arith.constant 0 : i32
    %c0_i32_0 = arith.constant 0 : i32
    %c0_i32_1 = arith.constant 0 : i32
    return %c0_i32, %c0_i32_0 : i32, i32
  }
  func.func @transform_3(%arg0: i32) -> (i32, i32) {
    %c0_i32 = arith.constant 0 : i32
    %c0_i32_0 = arith.constant 0 : i32
    %c0_i32_1 = arith.constant 0 : i32
    return %c0_i32, %c0_i32_0 : i32, i32
  }
  func.func @transform_4(%arg0: i32) -> (i32, i32) {
    %c0_i32 = arith.constant 0 : i32
    %c0_i32_0 = arith.constant 0 : i32
    %c0_i32_1 = arith.constant 0 : i32
    return %c0_i32, %c0_i32_0 : i32, i32
  }
  func.func @transform_5(%arg0: i32) -> (i32, i32) {
    %c0_i32 = arith.constant 0 : i32
    %c0_i32_0 = arith.constant 0 : i32
    return %arg0, %c0_i32 : i32, i32
  }
}

</mosaic_0001>

<llo_original>
// kernel: tpu_custom_call.1
$region0: #{tpu_custom_call.1}
  #allocation0 [shape = 'u32[]', space=smem, size = 0x4, offset = 0x4, fixed_abs, tag = 'smem constant byte address 0x4 - core index']
  #allocation1 [shape = 'u32[144,128]{1,0:T(1,128)}', space=vmem, size = 0x12000, scoped, tag = 'internal scratch']
  %s0 = inlined_call_operand.hbm [shape: bf16[1024,128], index: 0, kind: input, shape index: {}]
  %s1 = inlined_call_operand.hbm [shape: bf16[128,128], index: 1, kind: input, shape index: {}]
  %s2 = inlined_call_operand.vmem [shape: f32[1,128], index: 2, kind: input, shape index: {}]
  %s3 = inlined_call_operand.hbm [shape: f32[128,128], index: 3, kind: input, shape index: {}]
  %s4 = inlined_call_operand.vmem [shape: f32[1,128], index: 4, kind: input, shape index: {}]
  %s5 = inlined_call_operand.hbm [shape: f32[1024,128], index: 5, kind: output, shape index: {}]
  %s6 = sld [smem:[#allocation0]]
  $region65: #{tpu_custom_call.1} parent=0
    _
  %s8 = ssub.s32 1, %s6
  %s9 = scalar_select 0, %s8, %s6
  $region1: #{tpu_custom_call.1} parent=0
    #allocation2 [shape = 'u8[262144]{0}', space=vmem, size = 0x40000, scoped, tag = 'input window, operand 0']
    #allocation3 [shape = 's32[2]{0}', space=sflag, size = 0x8, scoped, tag = 'scoped memory for tpu_custom_call.1']
    #allocation4 [shape = 's32[2]{0}', space=sflag, size = 0x8, scoped, tag = 'scoped memory for tpu_custom_call.1']
    #allocation5 [shape = 'u8[32768]{0}', space=vmem, size = 0x8000, scoped, tag = 'input window, operand 1, single buffered']
    #allocation6 [shape = 's32[1]{0}', space=sflag, size = 0x4, scoped, tag = 'scoped memory for tpu_custom_call.1']
    #allocation7 [shape = 'u8[65536]{0}', space=vmem, size = 0x10000, scoped, tag = 'input window, operand 3, single buffered']
    #allocation8 [shape = 'u8[524288]{0}', space=vmem, size = 0x80000, scoped, tag = 'output window, operand 0']
    %10 = vsyncpa [#allocation3], 0
    %s11 = scalar_lea.sflag [#allocation3], 1
    %12 = vsyncpa %s11, 0
    %13 = vsyncpa [#allocation6], 0
    %14 = vsyncpa [#allocation4], 0
    %s15 = scalar_lea.sflag [#allocation4], 1
    %16 = vsyncpa %s15, 0
    loop: start=0, step=1, limit=4
    $region2: #{tpu_custom_call.1} parent=1 // loop_pre_header
      _
    $region3: #{tpu_custom_call.1} parent=1 // loop_header
      %s18 = sphi 0, %s22
      %p19 = scmp.ge.s32.totalorder %s18, 4
      %s28 = sphi 0, %s30
      %s31 = sphi 0, %s28
      %s32 = sphi 0, %s31
      %s48 = sphi 0, %s32
      %s52 = sphi 0, %s52
      %s54 = sphi 0, %s52
      %s55 = sphi 0, %s54
      %s69 = sphi 0, %s55
      %s73 = sphi 0, %s73
      %s75 = sphi 0, %s73
      %s76 = sphi 0, %s75
      %s90 = sphi 0, %s76
      %s94 = sphi 0, %s94
      %s96 = sphi 0, %s94
      %s97 = sphi 0, %s96
      %s111 = sphi 0, %s97
      %s115 = sphi 0, %s115
      %s117 = sphi 0, %s115
      %s118 = sphi 0, %s117
      %s132 = sphi 0, %s118
      %s138 = sphi 0, %s140
      %s141 = sphi 0, %s138
      %s142 = sphi 0, %s141
      %s158 = sphi 0, %s142
    $region4: #{tpu_custom_call.1} parent=1 // loop_header_branch
      %21 = sbr.rel (%p19) target = $region8
    $region5: #{tpu_custom_call.1} parent=1 // loop_body
      %s23 = ssub.s32 %s18, 1
      %s24 = ssub.s32 %s18, 2
      %s25 = sadd.s32 %s18, 1
      %s26 = ssub.s32 %s18, %s25
      %p27 = scmp.eq.s32.totalorder %s26, 0
      %s29 = sadd.s32 %s28, 1
      %s30 = scalar_select %p27, %s28, %s29
      %p33 = pneg %p27
      %p34 = scmp.eq.s32.totalorder %s18, 1
      %p35 = por %p33, %p34
      %p36 = scmp.ne.s32.totalorder %s28, %s31
      %p37 = scmp.eq.s32.totalorder %s18, 0
      %p38 = por %p36, %p37
      %p39 = scmp.ne.s32.totalorder %s28, %s31
      %p40 = scmp.eq.s32.totalorder %s23, 1
      %p41 = por %p39, %p40
      %p42 = scmp.ne.s32.totalorder %s31, %s32
      %p43 = scmp.eq.s32.totalorder %s23, 0
      %p44 = por %p42, %p43
      %p45 = scmp.ne.s32.totalorder %s31, %s32
      %p46 = scmp.eq.s32.totalorder %s24, 1
      %p47 = por %p45, %p46
      %p49 = scmp.ne.s32.totalorder %s32, %s48
      %p50 = scmp.eq.s32.totalorder %s24, 0
      %p51 = por %p49, %p50
      %s53 = sadd.s32 %s52, 1
      %p56 = scmp.eq.s32.totalorder %s18, 1
      %p57 = scmp.ne.s32.totalorder %s52, %s54
      %p58 = scmp.eq.s32.totalorder %s18, 0
      %p59 = por %p57, %p58
      %p60 = scmp.ne.s32.totalorder %s52, %s54
      %p61 = scmp.eq.s32.totalorder %s23, 1
      %p62 = por %p60, %p61
      %p63 = scmp.ne.s32.totalorder %s54, %s55
      %p64 = scmp.eq.s32.totalorder %s23, 0
      %p65 = por %p63, %p64
      %p66 = scmp.ne.s32.totalorder %s54, %s55
      %p67 = scmp.eq.s32.totalorder %s24, 1
      %p68 = por %p66, %p67
      %p70 = scmp.ne.s32.totalorder %s55, %s69
      %p71 = scmp.eq.s32.totalorder %s24, 0
      %p72 = por %p70, %p71
      %s74 = sadd.s32 %s73, 1
      %p77 = scmp.eq.s32.totalorder %s18, 1
      %p78 = scmp.ne.s32.totalorder %s73, %s75
      %p79 = scmp.eq.s32.totalorder %s18, 0
      %p80 = por %p78, %p79
      %p81 = scmp.ne.s32.totalorder %s73, %s75
      %p82 = scmp.eq.s32.totalorder %s23, 1
      %p83 = por %p81, %p82
      %p84 = scmp.ne.s32.totalorder %s75, %s76
      %p85 = scmp.eq.s32.totalorder %s23, 0
      %p86 = por %p84, %p85
      %p87 = scmp.ne.s32.totalorder %s75, %s76
      %p88 = scmp.eq.s32.totalorder %s24, 1
      %p89 = por %p87, %p88
      %p91 = scmp.ne.s32.totalorder %s76, %s90
      %p92 = scmp.eq.s32.totalorder %s24, 0
      %p93 = por %p91, %p92
      %s95 = sadd.s32 %s94, 1
      %p98 = scmp.eq.s32.totalorder %s18, 1
      %p99 = scmp.ne.s32.totalorder %s94, %s96
      %p100 = scmp.eq.s32.totalorder %s18, 0
      %p101 = por %p99, %p100
      %p102 = scmp.ne.s32.totalorder %s94, %s96
      %p103 = scmp.eq.s32.totalorder %s23, 1
      %p104 = por %p102, %p103
      %p105 = scmp.ne.s32.totalorder %s96, %s97
      %p106 = scmp.eq.s32.totalorder %s23, 0
      %p107 = por %p105, %p106
      %p108 = scmp.ne.s32.totalorder %s96, %s97
      %p109 = scmp.eq.s32.totalorder %s24, 1
      %p110 = por %p108, %p109
      %p112 = scmp.ne.s32.totalorder %s97, %s111
      %p113 = scmp.eq.s32.totalorder %s24, 0
      %p114 = por %p112, %p113
      %s116 = sadd.s32 %s115, 1
      %p119 = scmp.eq.s32.totalorder %s18, 1
      %p120 = scmp.ne.s32.totalorder %s115, %s117
      %p121 = scmp.eq.s32.totalorder %s18, 0
      %p122 = por %p120, %p121
      %p123 = scmp.ne.s32.totalorder %s115, %s117
      %p124 = scmp.eq.s32.totalorder %s23, 1
      %p125 = por %p123, %p124
      %p126 = scmp.ne.s32.totalorder %s117, %s118
      %p127 = scmp.eq.s32.totalorder %s23, 0
      %p128 = por %p126, %p127
      %p129 = scmp.ne.s32.totalorder %s117, %s118
      %p130 = scmp.eq.s32.totalorder %s24, 1
      %p131 = por %p129, %p130
      %p133 = scmp.ne.s32.totalorder %s118, %s132
      %p134 = scmp.eq.s32.totalorder %s24, 0
      %p135 = por %p133, %p134
      %s136 = ssub.s32 %s18, %s25
      %p137 = scmp.eq.s32.totalorder %s136, 0
      %s139 = sadd.s32 %s138, 1
      %s140 = scalar_select %p137, %s138, %s139
      %p143 = pneg %p137
      %p144 = scmp.eq.s32.totalorder %s18, 1
      %p145 = por %p143, %p144
      %p146 = scmp.ne.s32.totalorder %s138, %s141
      %p147 = scmp.eq.s32.totalorder %s18, 0
      %p148 = por %p146, %p147
      %p149 = scmp.ne.s32.totalorder %s138, %s141
      %p150 = scmp.eq.s32.totalorder %s23, 1
      %p151 = por %p149, %p150
      %p152 = scmp.ne.s32.totalorder %s141, %s142
      %p153 = scmp.eq.s32.totalorder %s23, 0
      %p154 = por %p152, %p153
      %p155 = scmp.ne.s32.totalorder %s141, %s142
      %p156 = scmp.eq.s32.totalorder %s24, 1
      %p157 = por %p155, %p156
      %p159 = scmp.ne.s32.totalorder %s142, %s158
      %p160 = scmp.eq.s32.totalorder %s24, 0
      %p161 = por %p159, %p160
      %p162 = scmp.le.s32.totalorder 1, %s18
      %p163 = scmp.lt.s32.totalorder %s18, 3
      %p164 = pnand %p162, %p163
      %p165 = pneg %p164
      // Predicated region
      $region9: #{tpu_custom_call.1} parent=5 // pred_check
        _
      $region10: #{tpu_custom_call.1} parent=5 // pred_check_branch
        %167 = sbr.rel (%p164) target = $region12
      $region11: #{tpu_custom_call.1} parent=5 // pred_region
        %s168 = ssub.s32 %s18, 1
        // Predicated region
        $region13: #{tpu_custom_call.1} parent=11 // pred_check
          %p169 = pneg %p65
        $region14: #{tpu_custom_call.1} parent=11 // pred_check_branch
          %171 = sbr.rel (%p169) target = $region16
        $region15: #{tpu_custom_call.1} parent=11 // pred_region
          %s173 = ssub.s32 1024, 1024
          %174 = vsyncadd [#allocation6], %s173
          %s175 = sshll.u32 [#allocation5], 4
          %s176 = int_to_ptr.vmem [resolvable:$true] %s175
          %181 = dma.hbm_to_vmem [thread:$0]  %s1, 1024, %s176, [#allocation6], 64, 64, 4
        $region16: #{tpu_custom_call.1} parent=11 // pred_fallthru
          _
        // Predicated region
        $region17: #{tpu_custom_call.1} parent=11 // pred_check
          %p182 = pneg %p86
        $region18: #{tpu_custom_call.1} parent=11 // pred_check_branch
          %184 = sbr.rel (%p182) target = $region20
        $region19: #{tpu_custom_call.1} parent=11 // pred_region
          _
        $region20: #{tpu_custom_call.1} parent=11 // pred_fallthru
          _
        // Predicated region
        $region21: #{tpu_custom_call.1} parent=11 // pred_check
          %p185 = pneg %p107
        $region22: #{tpu_custom_call.1} parent=11 // pred_check_branch
          %187 = sbr.rel (%p185) target = $region24
        $region23: #{tpu_custom_call.1} parent=11 // pred_region
          %s189 = ssub.s32 2048, 2048
          %190 = vsyncadd [#allocation6], %s189
          %s191 = sshll.u32 [#allocation7], 4
          %s192 = int_to_ptr.vmem [resolvable:$true] %s191
          %197 = dma.hbm_to_vmem [thread:$0]  %s3, 2048, %s192, [#allocation6], 128, 128, 8
        $region24: #{tpu_custom_call.1} parent=11 // pred_fallthru
          _
        // Predicated region
        $region25: #{tpu_custom_call.1} parent=11 // pred_check
          %p198 = pneg %p128
        $region26: #{tpu_custom_call.1} parent=11 // pred_check_branch
          %200 = sbr.rel (%p198) target = $region28
        $region27: #{tpu_custom_call.1} parent=11 // pred_region
          _
        $region28: #{tpu_custom_call.1} parent=11 // pred_fallthru
          _
      $region12: #{tpu_custom_call.1} parent=5 // pred_fallthru
        _
      %p201 = scmp.lt.s32.totalorder %s18, 2
      // Predicated region
      $region29: #{tpu_custom_call.1} parent=5 // pred_check
        %p202 = pneg %p201
      $region30: #{tpu_custom_call.1} parent=5 // pred_check_branch
        %204 = sbr.rel (%p202) target = $region32
      $region31: #{tpu_custom_call.1} parent=5 // pred_region
        // Predicated region
        $region33: #{tpu_custom_call.1} parent=31 // pred_check
          %p205 = pneg %p38
        $region34: #{tpu_custom_call.1} parent=31 // pred_check_branch
          %207 = sbr.rel (%p205) target = $region36
        $region35: #{tpu_custom_call.1} parent=31 // pred_region
          %s208 = sand.u32 %s28, 1
          %s209 = scalar_lea.sflag [#allocation3], %s208
          %s210 = sand.u32 %s28, 1
          %s211 = smul.addr %s210, 256
          %s212 = scalar_lea.vmem [#allocation2], %s211
          %s213 = smul.u32 64, %s18
          %s215 = ssub.s32 4096, 4096
          %216 = vsyncadd %s209, %s215
          %s217 = smul.addr %s213, 64
          %s218 = scalar_lea.hbm %s0, %s217
          %s219 = sshll.u32 %s212, 4
          %s220 = int_to_ptr.vmem [resolvable:$true] %s219
          %225 = dma.hbm_to_vmem [thread:$0]  %s218, 4096, %s220, %s209, 64, 64, 4
        $region36: #{tpu_custom_call.1} parent=31 // pred_fallthru
          _
      $region32: #{tpu_custom_call.1} parent=5 // pred_fallthru
        _
      %p226 = scmp.le.s32.totalorder 1, %s18
      %p227 = scmp.lt.s32.totalorder %s18, 3
      %p228 = pnand %p226, %p227
      %p229 = pneg %p228
      // Predicated region
      $region37: #{tpu_custom_call.1} parent=5 // pred_check
        _
      $region38: #{tpu_custom_call.1} parent=5 // pred_check_branch
        %231 = sbr.rel (%p228) target = $region40
      $region39: #{tpu_custom_call.1} parent=5 // pred_region
        %s232 = ssub.s32 %s18, 1
        %s233 = sand.u32 %s31, 1
        %s234 = scalar_lea.sflag [#allocation3], %s233
        %s235 = sand.u32 %s31, 1
        %s236 = smul.addr %s235, 256
        %s237 = scalar_lea.vmem [#allocation2], %s236
        // Predicated region
        $region41: #{tpu_custom_call.1} parent=39 // pred_check
          %p238 = pneg %p44
        $region42: #{tpu_custom_call.1} parent=39 // pred_check_branch
          %240 = sbr.rel (%p238) target = $region44
        $region43: #{tpu_custom_call.1} parent=39 // pred_region
          %241 = dma.done %s234, 4096
        $region44: #{tpu_custom_call.1} parent=39 // pred_fallthru
          _
        // Predicated region
        $region45: #{tpu_custom_call.1} parent=39 // pred_check
          %p242 = pneg %p65
        $region46: #{tpu_custom_call.1} parent=39 // pred_check_branch
          %244 = sbr.rel (%p242) target = $region48
        $region47: #{tpu_custom_call.1} parent=39 // pred_region
          %245 = dma.done [#allocation6], 1024
        $region48: #{tpu_custom_call.1} parent=39 // pred_fallthru
          _
        // Predicated region
        $region49: #{tpu_custom_call.1} parent=39 // pred_check
          %p246 = pneg %p107
        $region50: #{tpu_custom_call.1} parent=39 // pred_check_branch
          %248 = sbr.rel (%p246) target = $region52
        $region51: #{tpu_custom_call.1} parent=39 // pred_region
          %249 = dma.done [#allocation6], 2048
        $region52: #{tpu_custom_call.1} parent=39 // pred_fallthru
          _
        %s250 = sand.u32 %s31, 1
        %s251 = scalar_lea.sflag [#allocation3], %s250
        %s252 = sand.u32 %s31, 1
        %s253 = smul.addr %s252, 256
        %s254 = scalar_lea.vmem [#allocation2], %s253
        %p255 = pneg %p44
        %p256 = pneg %p41
        %p257 = pneg %p65
        %p258 = pneg %p62
        %p259 = pneg %p86
        %p260 = pneg %p83
        %p261 = pneg %p107
        %p262 = pneg %p104
        %p263 = pneg %p128
        %p264 = pneg %p125
        %p265 = pneg %p154
        %p266 = pneg %p151
        %s267 = sand.u32 %s141, 1
        %s268 = scalar_lea.sflag [#allocation4], %s267
        %s269 = sand.u32 %s141, 1
        %s270 = smul.addr %s269, 512
        %s271 = scalar_lea.vmem [#allocation8], %s270
        %s272 = smul.u32 64, %s23
        %s273 = smul.u32 64, %s23
        %v275 = vld [vmem:[%s237] sm:$0xf]
        %v276 = vld [vmem:[%s237 + $0x4] sm:$0xf]
        %v277 = vld [vmem:[%s237 + $0x8] sm:$0xf]
        %v278 = vld [vmem:[%s237 + $0xc] sm:$0xf]
        %v279 = vld [vmem:[%s237 + $0x10] sm:$0xf]
        %v280 = vld [vmem:[%s237 + $0x14] sm:$0xf]
        %v281 = vld [vmem:[%s237 + $0x18] sm:$0xf]
        %v282 = vld [vmem:[%s237 + $0x1c] sm:$0xf]
        %v283 = vld [vmem:[%s237 + $0x20] sm:$0xf]
        %v284 = vld [vmem:[%s237 + $0x24] sm:$0xf]
        %v285 = vld [vmem:[%s237 + $0x28] sm:$0xf]
        %v286 = vld [vmem:[%s237 + $0x2c] sm:$0xf]
        %v287 = vld [vmem:[%s237 + $0x30] sm:$0xf]
        %v288 = vld [vmem:[%s237 + $0x34] sm:$0xf]
        %v289 = vld [vmem:[%s237 + $0x38] sm:$0xf]
        %v290 = vld [vmem:[%s237 + $0x3c] sm:$0xf]
        %v291 = vld [vmem:[%s237 + $0x40] sm:$0xf]
        %v292 = vld [vmem:[%s237 + $0x44] sm:$0xf]
        %v293 = vld [vmem:[%s237 + $0x48] sm:$0xf]
        %v294 = vld [vmem:[%s237 + $0x4c] sm:$0xf]
        %v295 = vld [vmem:[%s237 + $0x50] sm:$0xf]
        %v296 = vld [vmem:[%s237 + $0x54] sm:$0xf]
        %v297 = vld [vmem:[%s237 + $0x58] sm:$0xf]
        %v298 = vld [vmem:[%s237 + $0x5c] sm:$0xf]
        %v299 = vld [vmem:[%s237 + $0x60] sm:$0xf]
        %v300 = vld [vmem:[%s237 + $0x64] sm:$0xf]
        %v301 = vld [vmem:[%s237 + $0x68] sm:$0xf]
        %v302 = vld [vmem:[%s237 + $0x6c] sm:$0xf]
        %v303 = vld [vmem:[%s237 + $0x70] sm:$0xf]
        %v304 = vld [vmem:[%s237 + $0x74] sm:$0xf]
        %v305 = vld [vmem:[%s237 + $0x78] sm:$0xf]
        %v306 = vld [vmem:[%s237 + $0x7c] sm:$0xf]
        %v307 = vld [vmem:[%s237 + $0x80] sm:$0xf]
        %v308 = vld [vmem:[%s237 + $0x84] sm:$0xf]
        %v309 = vld [vmem:[%s237 + $0x88] sm:$0xf]
        %v310 = vld [vmem:[%s237 + $0x8c] sm:$0xf]
        %v311 = vld [vmem:[%s237 + $0x90] sm:$0xf]
        %v312 = vld [vmem:[%s237 + $0x94] sm:$0xf]
        %v313 = vld [vmem:[%s237 + $0x98] sm:$0xf]
        %v314 = vld [vmem:[%s237 + $0x9c] sm:$0xf]
        %v315 = vld [vmem:[%s237 + $0xa0] sm:$0xf]
        %v316 = vld [vmem:[%s237 + $0xa4] sm:$0xf]
        %v317 = vld [vmem:[%s237 + $0xa8] sm:$0xf]
        %v318 = vld [vmem:[%s237 + $0xac] sm:$0xf]
        %v319 = vld [vmem:[%s237 + $0xb0] sm:$0xf]
        %v320 = vld [vmem:[%s237 + $0xb4] sm:$0xf]
        %v321 = vld [vmem:[%s237 + $0xb8] sm:$0xf]
        %v322 = vld [vmem:[%s237 + $0xbc] sm:$0xf]
        %v323 = vld [vmem:[%s237 + $0xc0] sm:$0xf]
        %v324 = vld [vmem:[%s237 + $0xc4] sm:$0xf]
        %v325 = vld [vmem:[%s237 + $0xc8] sm:$0xf]
        %v326 = vld [vmem:[%s237 + $0xcc] sm:$0xf]
        %v327 = vld [vmem:[%s237 + $0xd0] sm:$0xf]
        %v328 = vld [vmem:[%s237 + $0xd4] sm:$0xf]
        %v329 = vld [vmem:[%s237 + $0xd8] sm:$0xf]
        %v330 = vld [vmem:[%s237 + $0xdc] sm:$0xf]
        %v331 = vld [vmem:[%s237 + $0xe0] sm:$0xf]
        %v332 = vld [vmem:[%s237 + $0xe4] sm:$0xf]
        %v333 = vld [vmem:[%s237 + $0xe8] sm:$0xf]
        %v334 = vld [vmem:[%s237 + $0xec] sm:$0xf]
        %v335 = vld [vmem:[%s237 + $0xf0] sm:$0xf]
        %v336 = vld [vmem:[%s237 + $0xf4] sm:$0xf]
        %v337 = vld [vmem:[%s237 + $0xf8] sm:$0xf]
        %v338 = vld [vmem:[%s237 + $0xfc] sm:$0xf]
        %v339 = vld [vmem:[#allocation5] sm:$0xf]
        %v340 = vld [vmem:[#allocation5 + $0x4] sm:$0xf]
        %v341 = vld [vmem:[#allocation5 + $0x8] sm:$0xf]
        %v342 = vld [vmem:[#allocation5 + $0xc] sm:$0xf]
        %v343 = vld [vmem:[#allocation5 + $0x10] sm:$0xf]
        %v344 = vld [vmem:[#allocation5 + $0x14] sm:$0xf]
        %v345 = vld [vmem:[#allocation5 + $0x18] sm:$0xf]
        %v346 = vld [vmem:[#allocation5 + $0x1c] sm:$0xf]
        %v347 = vld [vmem:[#allocation5 + $0x20] sm:$0xf]
        %v348 = vld [vmem:[#allocation5 + $0x24] sm:$0xf]
        %v349 = vld [vmem:[#allocation5 + $0x28] sm:$0xf]
        %v350 = vld [vmem:[#allocation5 + $0x2c] sm:$0xf]
        %v351 = vld [vmem:[#allocation5 + $0x30] sm:$0xf]
        %v352 = vld [vmem:[#allocation5 + $0x34] sm:$0xf]
        %v353 = vld [vmem:[#allocation5 + $0x38] sm:$0xf]
        %v354 = vld [vmem:[#allocation5 + $0x3c] sm:$0xf]
        %v355 = vld [vmem:[%s2] sm:$0x1]
        %v357 = vlaneseq
        %v358 = vshrl.u32 %v357, 7
        %v359 = vsub.s32 0, %v358
        %v360 = vrot.slane %v355, %v359
        %v426 = vunpack.c.l.b16 %v275
        %v427 = vunpack.c.l.b16 %v276
        %v428 = vunpack.c.l.b16 %v277
        %v429 = vunpack.c.l.b16 %v278
        %v430 = vunpack.c.l.b16 %v279
        %v431 = vunpack.c.l.b16 %v280
        %v432 = vunpack.c.l.b16 %v281
        %v433 = vunpack.c.l.b16 %v282
        %v434 = vunpack.c.l.b16 %v283
        %v435 = vunpack.c.l.b16 %v284
        %v436 = vunpack.c.l.b16 %v285
        %v437 = vunpack.c.l.b16 %v286
        %v438 = vunpack.c.l.b16 %v287
        %v439 = vunpack.c.l.b16 %v288
        %v440 = vunpack.c.l.b16 %v289
        %v441 = vunpack.c.l.b16 %v290
        %v442 = vunpack.c.l.b16 %v291
        %v443 = vunpack.c.l.b16 %v292
        %v444 = vunpack.c.l.b16 %v293
        %v445 = vunpack.c.l.b16 %v294
        %v446 = vunpack.c.l.b16 %v295
        %v447 = vunpack.c.l.b16 %v296
        %v448 = vunpack.c.l.b16 %v297
        %v449 = vunpack.c.l.b16 %v298
        %v450 = vunpack.c.l.b16 %v299
        %v451 = vunpack.c.l.b16 %v300
        %v452 = vunpack.c.l.b16 %v301
        %v453 = vunpack.c.l.b16 %v302
        %v454 = vunpack.c.l.b16 %v303
        %v455 = vunpack.c.l.b16 %v304
        %v456 = vunpack.c.l.b16 %v305
        %v457 = vunpack.c.l.b16 %v306
        %v458 = vunpack.c.l.b16 %v307
        %v459 = vunpack.c.l.b16 %v308
        %v460 = vunpack.c.l.b16 %v309
        %v461 = vunpack.c.l.b16 %v310
        %v462 = vunpack.c.l.b16 %v311
        %v463 = vunpack.c.l.b16 %v312
        %v464 = vunpack.c.l.b16 %v313
        %v465 = vunpack.c.l.b16 %v314
        %v466 = vunpack.c.l.b16 %v315
        %v467 = vunpack.c.l.b16 %v316
        %v468 = vunpack.c.l.b16 %v317
        %v469 = vunpack.c.l.b16 %v318
        %v470 = vunpack.c.l.b16 %v319
        %v471 = vunpack.c.l.b16 %v320
        %v472 = vunpack.c.l.b16 %v321
        %v473 = vunpack.c.l.b16 %v322
        %v474 = vunpack.c.l.b16 %v323
        %v475 = vunpack.c.l.b16 %v324
        %v476 = vunpack.c.l.b16 %v325
        %v477 = vunpack.c.l.b16 %v326
        %v478 = vunpack.c.l.b16 %v327
        %v479 = vunpack.c.l.b16 %v328
        %v480 = vunpack.c.l.b16 %v329
        %v481 = vunpack.c.l.b16 %v330
        %v482 = vunpack.c.l.b16 %v331
        %v483 = vunpack.c.l.b16 %v332
        %v484 = vunpack.c.l.b16 %v333
        %v485 = vunpack.c.l.b16 %v334
        %v486 = vunpack.c.l.b16 %v335
        %v487 = vunpack.c.l.b16 %v336
        %v488 = vunpack.c.l.b16 %v337
        %v489 = vunpack.c.l.b16 %v338
        %v490 = vpack.c.b16 %v427, %v426
        %v491 = vpack.c.b16 %v429, %v428
        %v492 = vpack.c.b16 %v431, %v430
        %v493 = vpack.c.b16 %v433, %v432
        %v494 = vpack.c.b16 %v435, %v434
        %v495 = vpack.c.b16 %v437, %v436
        %v496 = vpack.c.b16 %v439, %v438
        %v497 = vpack.c.b16 %v441, %v440
        %v498 = vpack.c.b16 %v443, %v442
        %v499 = vpack.c.b16 %v445, %v444
        %v500 = vpack.c.b16 %v447, %v446
        %v501 = vpack.c.b16 %v449, %v448
        %v502 = vpack.c.b16 %v451, %v450
        %v503 = vpack.c.b16 %v453, %v452
        %v504 = vpack.c.b16 %v455, %v454
        %v505 = vpack.c.b16 %v457, %v456
        %v506 = vpack.c.b16 %v459, %v458
        %v507 = vpack.c.b16 %v461, %v460
        %v508 = vpack.c.b16 %v463, %v462
        %v509 = vpack.c.b16 %v465, %v464
        %v510 = vpack.c.b16 %v467, %v466
        %v511 = vpack.c.b16 %v469, %v468
        %v512 = vpack.c.b16 %v471, %v470
        %v513 = vpack.c.b16 %v473, %v472
        %v514 = vpack.c.b16 %v475, %v474
        %v515 = vpack.c.b16 %v477, %v476
        %v516 = vpack.c.b16 %v479, %v478
        %v517 = vpack.c.b16 %v481, %v480
        %v518 = vpack.c.b16 %v483, %v482
        %v519 = vpack.c.b16 %v485, %v484
        %v520 = vpack.c.b16 %v487, %v486
        %v521 = vpack.c.b16 %v489, %v488
        %v570 = vunpack.c.l.b16 %v339
        %v571 = vunpack.c.l.b16 %v340
        %v572 = vunpack.c.l.b16 %v341
        %v573 = vunpack.c.l.b16 %v342
        %v574 = vunpack.c.l.b16 %v343
        %v575 = vunpack.c.l.b16 %v344
        %v576 = vunpack.c.l.b16 %v345
        %v577 = vunpack.c.l.b16 %v346
        %v578 = vunpack.c.l.b16 %v347
        %v579 = vunpack.c.l.b16 %v348
        %v580 = vunpack.c.l.b16 %v349
        %v581 = vunpack.c.l.b16 %v350
        %v582 = vunpack.c.l.b16 %v351
        %v583 = vunpack.c.l.b16 %v352
        %v584 = vunpack.c.l.b16 %v353
        %v585 = vunpack.c.l.b16 %v354
        %v586 = vpack.c.b16 %v571, %v570
        %v587 = vpack.c.b16 %v573, %v572
        %v588 = vpack.c.b16 %v575, %v574
        %v589 = vpack.c.b16 %v577, %v576
        %v590 = vpack.c.b16 %v579, %v578
        %v591 = vpack.c.b16 %v581, %v580
        %v592 = vpack.c.b16 %v583, %v582
        %v593 = vpack.c.b16 %v585, %v584
        %602 = vmatprep.subr.bf16.mxu0 0
        %603 = vmatpush1.bf16.msra.mxu0 %v593
        %604 = vmatprep.subr.bf16.mxu0 0
        %605 = vmatpush1.bf16.msra.mxu0 %v592
        %606 = vmatprep.subr.bf16.mxu0 0
        %607 = vmatpush1.bf16.msra.mxu0 %v591
        %608 = vmatprep.subr.bf16.mxu0 0
        %609 = vmatpush1.bf16.msra.mxu0 %v590
        %610 = vmatprep.subr.bf16.mxu0 0
        %611 = vmatpush1.bf16.msra.mxu0 %v589
        %612 = vmatprep.subr.bf16.mxu0 0
        %613 = vmatpush1.bf16.msra.mxu0 %v588
        %614 = vmatprep.subr.bf16.mxu0 0
        %615 = vmatpush1.bf16.msra.mxu0 %v587
        %616 = vmatprep.subr.bf16.mxu0 0
        %617 = vmatpush1.bf16.msra.mxu0 %v586
        %618 = vmatprep.subr.bf16.mxu0 0
        %619 = vmatpush2.bf16.msra.mxu0 0
        %620 = vmatprep.subr.bf16.mxu0 0
        %621 = vmatpush2.bf16.msra.mxu0 0
        %622 = vmatprep.subr.bf16.mxu0 0
        %623 = vmatpush2.bf16.msra.mxu0 0
        %624 = vmatprep.subr.bf16.mxu0 0
        %625 = vmatpush2.bf16.msra.mxu0 0
        %626 = vmatprep.subr.bf16.mxu0 0
        %627 = vmatpush2.bf16.msra.mxu0 0
        %628 = vmatprep.subr.bf16.mxu0 0
        %629 = vmatpush2.bf16.msra.mxu0 0
        %630 = vmatprep.subr.bf16.mxu0 0
        %631 = vmatpush2.bf16.msra.mxu0 0
        %632 = vmatprep.subr.bf16.mxu0 0
        %633 = vmatpush2.bf16.msra.mxu0 0
        %634 = vmatprep.mubr.bf16.mxu0 0
        %635 = vmatmul.mubr.bf16.gmra.mxu0 %v490
        %v636 = vpop.f32.mrf.mxu0
        %v637 = vadd.f32 %v360, %v636
        %v638 = vpop.f32.mrf.mxu0
        %v639 = vpop.f32.mrf.mxu0
        %v640 = vadd.f32 %v360, %v639
        %v641 = vpop.f32.mrf.mxu0
        %642 = vmatprep.mubr.bf16.mxu0 0
        %643 = vmatmul.mubr.bf16.gmra.mxu0 %v491
        %v644 = vpop.f32.mrf.mxu0
        %v645 = vadd.f32 %v360, %v644
        %v646 = vpop.f32.mrf.mxu0
        %v647 = vpop.f32.mrf.mxu0
        %v648 = vadd.f32 %v360, %v647
        %v649 = vpop.f32.mrf.mxu0
        %650 = vmatprep.mubr.bf16.mxu0 0
        %651 = vmatmul.mubr.bf16.gmra.mxu0 %v492
        %v652 = vpop.f32.mrf.mxu0
        %v653 = vadd.f32 %v360, %v652
        %v654 = vpop.f32.mrf.mxu0
        %v655 = vpop.f32.mrf.mxu0
        %v656 = vadd.f32 %v360, %v655
        %v657 = vpop.f32.mrf.mxu0
        %658 = vmatprep.mubr.bf16.mxu0 0
        %659 = vmatmul.mubr.bf16.gmra.mxu0 %v493
        %v660 = vpop.f32.mrf.mxu0
        %v661 = vadd.f32 %v360, %v660
        %v662 = vpop.f32.mrf.mxu0
        %v663 = vpop.f32.mrf.mxu0
        %v664 = vadd.f32 %v360, %v663
        %v665 = vpop.f32.mrf.mxu0
        %666 = vmatprep.mubr.bf16.mxu0 0
        %667 = vmatmul.mubr.bf16.gmra.mxu0 %v494
        %v668 = vpop.f32.mrf.mxu0
        %v669 = vadd.f32 %v360, %v668
        %v670 = vpop.f32.mrf.mxu0
        %v671 = vpop.f32.mrf.mxu0
        %v672 = vadd.f32 %v360, %v671
        %v673 = vpop.f32.mrf.mxu0
        %674 = vmatprep.mubr.bf16.mxu0 0
        %675 = vmatmul.mubr.bf16.gmra.mxu0 %v495
        %v676 = vpop.f32.mrf.mxu0
        %v677 = vadd.f32 %v360, %v676
        %v678 = vpop.f32.mrf.mxu0
        %v679 = vpop.f32.mrf.mxu0
        %v680 = vadd.f32 %v360, %v679
        %v681 = vpop.f32.mrf.mxu0
        %682 = vmatprep.mubr.bf16.mxu0 0
        %683 = vmatmul.mubr.bf16.gmra.mxu0 %v496
        %v684 = vpop.f32.mrf.mxu0
        %v685 = vadd.f32 %v360, %v684
        %v686 = vpop.f32.mrf.mxu0
        %v687 = vpop.f32.mrf.mxu0
        %v688 = vadd.f32 %v360, %v687
        %v689 = vpop.f32.mrf.mxu0
        %690 = vmatprep.mubr.bf16.mxu0 0
        %691 = vmatmul.mubr.bf16.gmra.mxu0 %v497
        %v692 = vpop.f32.mrf.mxu0
        %v693 = vadd.f32 %v360, %v692
        %v694 = vpop.f32.mrf.mxu0
        %v695 = vpop.f32.mrf.mxu0
        %v696 = vadd.f32 %v360, %v695
        %v697 = vpop.f32.mrf.mxu0
        %698 = vmatprep.mubr.bf16.mxu0 0
        %699 = vmatmul.mubr.bf16.gmra.mxu0 %v498
        %v700 = vpop.f32.mrf.mxu0
        %v701 = vadd.f32 %v360, %v700
        %v702 = vpop.f32.mrf.mxu0
        %v703 = vpop.f32.mrf.mxu0
        %v704 = vadd.f32 %v360, %v703
        %v705 = vpop.f32.mrf.mxu0
        %706 = vmatprep.mubr.bf16.mxu0 0
        %707 = vmatmul.mubr.bf16.gmra.mxu0 %v499
        %v708 = vpop.f32.mrf.mxu0
        %v709 = vadd.f32 %v360, %v708
        %v710 = vpop.f32.mrf.mxu0
        %v711 = vpop.f32.mrf.mxu0
        %v712 = vadd.f32 %v360, %v711
        %v713 = vpop.f32.mrf.mxu0
        %714 = vmatprep.mubr.bf16.mxu0 0
        %715 = vmatmul.mubr.bf16.gmra.mxu0 %v500
        %v716 = vpop.f32.mrf.mxu0
        %v717 = vadd.f32 %v360, %v716
        %v718 = vpop.f32.mrf.mxu0
        %v719 = vpop.f32.mrf.mxu0
        %v720 = vadd.f32 %v360, %v719
        %v721 = vpop.f32.mrf.mxu0
        %722 = vmatprep.mubr.bf16.mxu0 0
        %723 = vmatmul.mubr.bf16.gmra.mxu0 %v501
        %v724 = vpop.f32.mrf.mxu0
        %v725 = vadd.f32 %v360, %v724
        %v726 = vpop.f32.mrf.mxu0
        %v727 = vpop.f32.mrf.mxu0
        %v728 = vadd.f32 %v360, %v727
        %v729 = vpop.f32.mrf.mxu0
        %730 = vmatprep.mubr.bf16.mxu0 0
        %731 = vmatmul.mubr.bf16.gmra.mxu0 %v502
        %v732 = vpop.f32.mrf.mxu0
        %v733 = vadd.f32 %v360, %v732
        %v734 = vpop.f32.mrf.mxu0
        %v735 = vpop.f32.mrf.mxu0
        %v736 = vadd.f32 %v360, %v735
        %v737 = vpop.f32.mrf.mxu0
        %738 = vmatprep.mubr.bf16.mxu0 0
        %739 = vmatmul.mubr.bf16.gmra.mxu0 %v503
        %v740 = vpop.f32.mrf.mxu0
        %v741 = vadd.f32 %v360, %v740
        %v742 = vpop.f32.mrf.mxu0
        %v743 = vpop.f32.mrf.mxu0
        %v744 = vadd.f32 %v360, %v743
        %v745 = vpop.f32.mrf.mxu0
        %746 = vmatprep.mubr.bf16.mxu0 0
        %747 = vmatmul.mubr.bf16.gmra.mxu0 %v504
        %v748 = vpop.f32.mrf.mxu0
        %v749 = vadd.f32 %v360, %v748
        %v750 = vpop.f32.mrf.mxu0
        %v751 = vpop.f32.mrf.mxu0
        %v752 = vadd.f32 %v360, %v751
        %v753 = vpop.f32.mrf.mxu0
        %754 = vmatprep.mubr.bf16.mxu0 0
        %755 = vmatmul.mubr.bf16.gmra.mxu0 %v505
        %v756 = vpop.f32.mrf.mxu0
        %v757 = vadd.f32 %v360, %v756
        %v758 = vpop.f32.mrf.mxu0
        %v759 = vpop.f32.mrf.mxu0
        %v760 = vadd.f32 %v360, %v759
        %v761 = vpop.f32.mrf.mxu0
        %762 = vmatprep.mubr.bf16.mxu0 0
        %763 = vmatmul.mubr.bf16.gmra.mxu0 %v506
        %v764 = vpop.f32.mrf.mxu0
        %v765 = vadd.f32 %v360, %v764
        %v766 = vpop.f32.mrf.mxu0
        %v767 = vpop.f32.mrf.mxu0
        %v768 = vadd.f32 %v360, %v767
        %v769 = vpop.f32.mrf.mxu0
        %770 = vmatprep.mubr.bf16.mxu0 0
        %771 = vmatmul.mubr.bf16.gmra.mxu0 %v507
        %v772 = vpop.f32.mrf.mxu0
        %v773 = vadd.f32 %v360, %v772
        %v774 = vpop.f32.mrf.mxu0
        %v775 = vpop.f32.mrf.mxu0
        %v776 = vadd.f32 %v360, %v775
        %v777 = vpop.f32.mrf.mxu0
        %778 = vmatprep.mubr.bf16.mxu0 0
        %779 = vmatmul.mubr.bf16.gmra.mxu0 %v508
        %v780 = vpop.f32.mrf.mxu0
        %v781 = vadd.f32 %v360, %v780
        %v782 = vpop.f32.mrf.mxu0
        %v783 = vpop.f32.mrf.mxu0
        %v784 = vadd.f32 %v360, %v783
        %v785 = vpop.f32.mrf.mxu0
        %786 = vmatprep.mubr.bf16.mxu0 0
        %787 = vmatmul.mubr.bf16.gmra.mxu0 %v509
        %v788 = vpop.f32.mrf.mxu0
        %v789 = vadd.f32 %v360, %v788
        %v790 = vpop.f32.mrf.mxu0
        %v791 = vpop.f32.mrf.mxu0
        %v792 = vadd.f32 %v360, %v791
        %v793 = vpop.f32.mrf.mxu0
        %794 = vmatprep.mubr.bf16.mxu0 0
        %795 = vmatmul.mubr.bf16.gmra.mxu0 %v510
        %v796 = vpop.f32.mrf.mxu0
        %v797 = vadd.f32 %v360, %v796
        %v798 = vpop.f32.mrf.mxu0
        %v799 = vpop.f32.mrf.mxu0
        %v800 = vadd.f32 %v360, %v799
        %v801 = vpop.f32.mrf.mxu0
        %802 = vmatprep.mubr.bf16.mxu0 0
        %803 = vmatmul.mubr.bf16.gmra.mxu0 %v511
        %v804 = vpop.f32.mrf.mxu0
        %v805 = vadd.f32 %v360, %v804
        %v806 = vpop.f32.mrf.mxu0
        %v807 = vpop.f32.mrf.mxu0
        %v808 = vadd.f32 %v360, %v807
        %v809 = vpop.f32.mrf.mxu0
        %810 = vmatprep.mubr.bf16.mxu0 0
        %811 = vmatmul.mubr.bf16.gmra.mxu0 %v512
        %v812 = vpop.f32.mrf.mxu0
        %v813 = vadd.f32 %v360, %v812
        %v814 = vpop.f32.mrf.mxu0
        %v815 = vpop.f32.mrf.mxu0
        %v816 = vadd.f32 %v360, %v815
        %v817 = vpop.f32.mrf.mxu0
        %818 = vmatprep.mubr.bf16.mxu0 0
        %819 = vmatmul.mubr.bf16.gmra.mxu0 %v513
        %v820 = vpop.f32.mrf.mxu0
        %v821 = vadd.f32 %v360, %v820
        %v822 = vpop.f32.mrf.mxu0
        %v823 = vpop.f32.mrf.mxu0
        %v824 = vadd.f32 %v360, %v823
        %v825 = vpop.f32.mrf.mxu0
        %826 = vmatprep.mubr.bf16.mxu0 0
        %827 = vmatmul.mubr.bf16.gmra.mxu0 %v514
        %v828 = vpop.f32.mrf.mxu0
        %v829 = vadd.f32 %v360, %v828
        %v830 = vpop.f32.mrf.mxu0
        %v831 = vpop.f32.mrf.mxu0
        %v832 = vadd.f32 %v360, %v831
        %v833 = vpop.f32.mrf.mxu0
        %834 = vmatprep.mubr.bf16.mxu0 0
        %835 = vmatmul.mubr.bf16.gmra.mxu0 %v515
        %v836 = vpop.f32.mrf.mxu0
        %v837 = vadd.f32 %v360, %v836
        %v838 = vpop.f32.mrf.mxu0
        %v839 = vpop.f32.mrf.mxu0
        %v840 = vadd.f32 %v360, %v839
        %v841 = vpop.f32.mrf.mxu0
        %842 = vmatprep.mubr.bf16.mxu0 0
        %843 = vmatmul.mubr.bf16.gmra.mxu0 %v516
        %v844 = vpop.f32.mrf.mxu0
        %v845 = vadd.f32 %v360, %v844
        %v846 = vpop.f32.mrf.mxu0
        %v847 = vpop.f32.mrf.mxu0
        %v848 = vadd.f32 %v360, %v847
        %v849 = vpop.f32.mrf.mxu0
        %850 = vmatprep.mubr.bf16.mxu0 0
        %851 = vmatmul.mubr.bf16.gmra.mxu0 %v517
        %v852 = vpop.f32.mrf.mxu0
        %v853 = vadd.f32 %v360, %v852
        %v854 = vpop.f32.mrf.mxu0
        %v855 = vpop.f32.mrf.mxu0
        %v856 = vadd.f32 %v360, %v855
        %v857 = vpop.f32.mrf.mxu0
        %858 = vmatprep.mubr.bf16.mxu0 0
        %859 = vmatmul.mubr.bf16.gmra.mxu0 %v518
        %v860 = vpop.f32.mrf.mxu0
        %v861 = vadd.f32 %v360, %v860
        %v862 = vpop.f32.mrf.mxu0
        %v863 = vpop.f32.mrf.mxu0
        %v864 = vadd.f32 %v360, %v863
        %v865 = vpop.f32.mrf.mxu0
        %866 = vmatprep.mubr.bf16.mxu0 0
        %867 = vmatmul.mubr.bf16.gmra.mxu0 %v519
        %v868 = vpop.f32.mrf.mxu0
        %v869 = vadd.f32 %v360, %v868
        %v870 = vpop.f32.mrf.mxu0
        %v871 = vpop.f32.mrf.mxu0
        %v872 = vadd.f32 %v360, %v871
        %v873 = vpop.f32.mrf.mxu0
        %874 = vmatprep.mubr.bf16.mxu0 0
        %875 = vmatmul.mubr.bf16.gmra.mxu0 %v520
        %v876 = vpop.f32.mrf.mxu0
        %v877 = vadd.f32 %v360, %v876
        %v878 = vpop.f32.mrf.mxu0
        %v879 = vpop.f32.mrf.mxu0
        %v880 = vadd.f32 %v360, %v879
        %v881 = vpop.f32.mrf.mxu0
        %882 = vmatprep.mubr.bf16.mxu0 0
        %883 = vmatmul.mubr.bf16.gmra.mxu0 %v521
        %v884 = vpop.f32.mrf.mxu0
        %v885 = vadd.f32 %v360, %v884
        %v886 = vpop.f32.mrf.mxu0
        %v887 = vpop.f32.mrf.mxu0
        %v888 = vadd.f32 %v360, %v887
        %v889 = vpop.f32.mrf.mxu0
        %890 = vdwg.mxu0
        %v891 = vmul.f32 %v637, %v637
        %v892 = vmul.f32 %v640, %v640
        %v893 = vmul.f32 %v645, %v645
        %v894 = vmul.f32 %v648, %v648
        %v895 = vmul.f32 %v653, %v653
        %v896 = vmul.f32 %v656, %v656
        %v897 = vmul.f32 %v661, %v661
        %v898 = vmul.f32 %v664, %v664
        %v899 = vmul.f32 %v669, %v669
        %v900 = vmul.f32 %v672, %v672
        %v901 = vmul.f32 %v677, %v677
        %v902 = vmul.f32 %v680, %v680
        %v903 = vmul.f32 %v685, %v685
        %v904 = vmul.f32 %v688, %v688
        %v905 = vmul.f32 %v693, %v693
        %v906 = vmul.f32 %v696, %v696
        %v907 = vmul.f32 %v701, %v701
        %v908 = vmul.f32 %v704, %v704
        %v909 = vmul.f32 %v709, %v709
        %v910 = vmul.f32 %v712, %v712
        %v911 = vmul.f32 %v717, %v717
        %v912 = vmul.f32 %v720, %v720
        %v913 = vmul.f32 %v725, %v725
        %v914 = vmul.f32 %v728, %v728
        %v915 = vmul.f32 %v733, %v733
        %v916 = vmul.f32 %v736, %v736
        %v917 = vmul.f32 %v741, %v741
        %v918 = vmul.f32 %v744, %v744
        %v919 = vmul.f32 %v749, %v749
        %v920 = vmul.f32 %v752, %v752
        %v921 = vmul.f32 %v757, %v757
        %v922 = vmul.f32 %v760, %v760
        %v923 = vmul.f32 %v765, %v765
        %v924 = vmul.f32 %v768, %v768
        %v925 = vmul.f32 %v773, %v773
        %v926 = vmul.f32 %v776, %v776
        %v927 = vmul.f32 %v781, %v781
        %v928 = vmul.f32 %v784, %v784
        %v929 = vmul.f32 %v789, %v789
        %v930 = vmul.f32 %v792, %v792
        %v931 = vmul.f32 %v797, %v797
        %v932 = vmul.f32 %v800, %v800
        %v933 = vmul.f32 %v805, %v805
        %v934 = vmul.f32 %v808, %v808
        %v935 = vmul.f32 %v813, %v813
        %v936 = vmul.f32 %v816, %v816
        %v937 = vmul.f32 %v821, %v821
        %v938 = vmul.f32 %v824, %v824
        %v939 = vmul.f32 %v829, %v829
        %v940 = vmul.f32 %v832, %v832
        %v941 = vmul.f32 %v837, %v837
        %v942 = vmul.f32 %v840, %v840
        %v943 = vmul.f32 %v845, %v845
        %v944 = vmul.f32 %v848, %v848
        %v945 = vmul.f32 %v853, %v853
        %v946 = vmul.f32 %v856, %v856
        %v947 = vmul.f32 %v861, %v861
        %v948 = vmul.f32 %v864, %v864
        %v949 = vmul.f32 %v869, %v869
        %v950 = vmul.f32 %v872, %v872
        %v951 = vmul.f32 %v877, %v877
        %v952 = vmul.f32 %v880, %v880
        %v953 = vmul.f32 %v885, %v885
        %v954 = vmul.f32 %v888, %v888
        %v955 = vmul.f32 %v637, %v891
        %v956 = vmul.f32 %v640, %v892
        %v957 = vmul.f32 %v645, %v893
        %v958 = vmul.f32 %v648, %v894
        %v959 = vmul.f32 %v653, %v895
        %v960 = vmul.f32 %v656, %v896
        %v961 = vmul.f32 %v661, %v897
        %v962 = vmul.f32 %v664, %v898
        %v963 = vmul.f32 %v669, %v899
        %v964 = vmul.f32 %v672, %v900
        %v965 = vmul.f32 %v677, %v901
        %v966 = vmul.f32 %v680, %v902
        %v967 = vmul.f32 %v685, %v903
        %v968 = vmul.f32 %v688, %v904
        %v969 = vmul.f32 %v693, %v905
        %v970 = vmul.f32 %v696, %v906
        %v971 = vmul.f32 %v701, %v907
        %v972 = vmul.f32 %v704, %v908
        %v973 = vmul.f32 %v709, %v909
        %v974 = vmul.f32 %v712, %v910
        %v975 = vmul.f32 %v717, %v911
        %v976 = vmul.f32 %v720, %v912
        %v977 = vmul.f32 %v725, %v913
        %v978 = vmul.f32 %v728, %v914
        %v979 = vmul.f32 %v733, %v915
        %v980 = vmul.f32 %v736, %v916
        %v981 = vmul.f32 %v741, %v917
        %v982 = vmul.f32 %v744, %v918
        %v983 = vmul.f32 %v749, %v919
        %v984 = vmul.f32 %v752, %v920
        %v985 = vmul.f32 %v757, %v921
        %v986 = vmul.f32 %v760, %v922
        %v987 = vmul.f32 %v765, %v923
        %v988 = vmul.f32 %v768, %v924
        %v989 = vmul.f32 %v773, %v925
        %v990 = vmul.f32 %v776, %v926
        %v991 = vmul.f32 %v781, %v927
        %v992 = vmul.f32 %v784, %v928
        %v993 = vmul.f32 %v789, %v929
        %v994 = vmul.f32 %v792, %v930
        %v995 = vmul.f32 %v797, %v931
        %v996 = vmul.f32 %v800, %v932
        %v997 = vmul.f32 %v805, %v933
        %v998 = vmul.f32 %v808, %v934
        %v999 = vmul.f32 %v813, %v935
        %v1000 = vmul.f32 %v816, %v936
        %v1001 = vmul.f32 %v821, %v937
        %v1002 = vmul.f32 %v824, %v938
        %v1003 = vmul.f32 %v829, %v939
        %v1004 = vmul.f32 %v832, %v940
        %v1005 = vmul.f32 %v837, %v941
        %v1006 = vmul.f32 %v840, %v942
        %v1007 = vmul.f32 %v845, %v943
        %v1008 = vmul.f32 %v848, %v944
        %v1009 = vmul.f32 %v853, %v945
        %v1010 = vmul.f32 %v856, %v946
        %v1011 = vmul.f32 %v861, %v947
        %v1012 = vmul.f32 %v864, %v948
        %v1013 = vmul.f32 %v869, %v949
        %v1014 = vmul.f32 %v872, %v950
        %v1015 = vmul.f32 %v877, %v951
        %v1016 = vmul.f32 %v880, %v952
        %v1017 = vmul.f32 %v885, %v953
        %v1018 = vmul.f32 %v888, %v954
        %v1019 = vmul.f32 %v955, 0.044715
        %v1020 = vmul.f32 %v956, 0.044715
        %v1021 = vmul.f32 %v957, 0.044715
        %v1022 = vmul.f32 %v958, 0.044715
        %v1023 = vmul.f32 %v959, 0.044715
        %v1024 = vmul.f32 %v960, 0.044715
        %v1025 = vmul.f32 %v961, 0.044715
        %v1026 = vmul.f32 %v962, 0.044715
        %v1027 = vmul.f32 %v963, 0.044715
        %v1028 = vmul.f32 %v964, 0.044715
        %v1029 = vmul.f32 %v965, 0.044715
        %v1030 = vmul.f32 %v966, 0.044715
        %v1031 = vmul.f32 %v967, 0.044715
        %v1032 = vmul.f32 %v968, 0.044715
        %v1033 = vmul.f32 %v969, 0.044715
        %v1034 = vmul.f32 %v970, 0.044715
        %v1035 = vmul.f32 %v971, 0.044715
        %v1036 = vmul.f32 %v972, 0.044715
        %v1037 = vmul.f32 %v973, 0.044715
        %v1038 = vmul.f32 %v974, 0.044715
        %v1039 = vmul.f32 %v975, 0.044715
        %v1040 = vmul.f32 %v976, 0.044715
        %v1041 = vmul.f32 %v977, 0.044715
        %v1042 = vmul.f32 %v978, 0.044715
        %v1043 = vmul.f32 %v979, 0.044715
        %v1044 = vmul.f32 %v980, 0.044715
        %v1045 = vmul.f32 %v981, 0.044715
        %v1046 = vmul.f32 %v982, 0.044715
        %v1047 = vmul.f32 %v983, 0.044715
        %v1048 = vmul.f32 %v984, 0.044715
        %v1049 = vmul.f32 %v985, 0.044715
        %v1050 = vmul.f32 %v986, 0.044715
        %v1051 = vmul.f32 %v987, 0.044715
        %v1052 = vmul.f32 %v988, 0.044715
        %v1053 = vmul.f32 %v989, 0.044715
        %v1054 = vmul.f32 %v990, 0.044715
        %v1055 = vmul.f32 %v991, 0.044715
        %v1056 = vmul.f32 %v992, 0.044715
        %v1057 = vmul.f32 %v993, 0.044715
        %v1058 = vmul.f32 %v994, 0.044715
        %v1059 = vmul.f32 %v995, 0.044715
        %v1060 = vmul.f32 %v996, 0.044715
        %v1061 = vmul.f32 %v997, 0.044715
        %v1062 = vmul.f32 %v998, 0.044715
        %v1063 = vmul.f32 %v999, 0.044715
        %v1064 = vmul.f32 %v1000, 0.044715
        %v1065 = vmul.f32 %v1001, 0.044715
        %v1066 = vmul.f32 %v1002, 0.044715
        %v1067 = vmul.f32 %v1003, 0.044715
        %v1068 = vmul.f32 %v1004, 0.044715
        %v1069 = vmul.f32 %v1005, 0.044715
        %v1070 = vmul.f32 %v1006, 0.044715
        %v1071 = vmul.f32 %v1007, 0.044715
        %v1072 = vmul.f32 %v1008, 0.044715
        %v1073 = vmul.f32 %v1009, 0.044715
        %v1074 = vmul.f32 %v1010, 0.044715
        %v1075 = vmul.f32 %v1011, 0.044715
        %v1076 = vmul.f32 %v1012, 0.044715
        %v1077 = vmul.f32 %v1013, 0.044715
        %v1078 = vmul.f32 %v1014, 0.044715
        %v1079 = vmul.f32 %v1015, 0.044715
        %v1080 = vmul.f32 %v1016, 0.044715
        %v1081 = vmul.f32 %v1017, 0.044715
        %v1082 = vmul.f32 %v1018, 0.044715
        %v1083 = vadd.f32 %v637, %v1019
        %v1084 = vadd.f32 %v640, %v1020
        %v1085 = vadd.f32 %v645, %v1021
        %v1086 = vadd.f32 %v648, %v1022
        %v1087 = vadd.f32 %v653, %v1023
        %v1088 = vadd.f32 %v656, %v1024
        %v1089 = vadd.f32 %v661, %v1025
        %v1090 = vadd.f32 %v664, %v1026
        %v1091 = vadd.f32 %v669, %v1027
        %v1092 = vadd.f32 %v672, %v1028
        %v1093 = vadd.f32 %v677, %v1029
        %v1094 = vadd.f32 %v680, %v1030
        %v1095 = vadd.f32 %v685, %v1031
        %v1096 = vadd.f32 %v688, %v1032
        %v1097 = vadd.f32 %v693, %v1033
        %v1098 = vadd.f32 %v696, %v1034
        %v1099 = vadd.f32 %v701, %v1035
        %v1100 = vadd.f32 %v704, %v1036
        %v1101 = vadd.f32 %v709, %v1037
        %v1102 = vadd.f32 %v712, %v1038
        %v1103 = vadd.f32 %v717, %v1039
        %v1104 = vadd.f32 %v720, %v1040
        %v1105 = vadd.f32 %v725, %v1041
        %v1106 = vadd.f32 %v728, %v1042
        %v1107 = vadd.f32 %v733, %v1043
        %v1108 = vadd.f32 %v736, %v1044
        %v1109 = vadd.f32 %v741, %v1045
        %v1110 = vadd.f32 %v744, %v1046
        %v1111 = vadd.f32 %v749, %v1047
        %v1112 = vadd.f32 %v752, %v1048
        %v1113 = vadd.f32 %v757, %v1049
        %v1114 = vadd.f32 %v760, %v1050
        %v1115 = vadd.f32 %v765, %v1051
        %v1116 = vadd.f32 %v768, %v1052
        %v1117 = vadd.f32 %v773, %v1053
        %v1118 = vadd.f32 %v776, %v1054
        %v1119 = vadd.f32 %v781, %v1055
        %v1120 = vadd.f32 %v784, %v1056
        %v1121 = vadd.f32 %v789, %v1057
        %v1122 = vadd.f32 %v792, %v1058
        %v1123 = vadd.f32 %v797, %v1059
        %v1124 = vadd.f32 %v800, %v1060
        %v1125 = vadd.f32 %v805, %v1061
        %v1126 = vadd.f32 %v808, %v1062
        %v1127 = vadd.f32 %v813, %v1063
        %v1128 = vadd.f32 %v816, %v1064
        %v1129 = vadd.f32 %v821, %v1065
        %v1130 = vadd.f32 %v824, %v1066
        %v1131 = vadd.f32 %v829, %v1067
        %v1132 = vadd.f32 %v832, %v1068
        %v1133 = vadd.f32 %v837, %v1069
        %v1134 = vadd.f32 %v840, %v1070
        %v1135 = vadd.f32 %v845, %v1071
        %v1136 = vadd.f32 %v848, %v1072
        %v1137 = vadd.f32 %v853, %v1073
        %v1138 = vadd.f32 %v856, %v1074
        %v1139 = vadd.f32 %v861, %v1075
        %v1140 = vadd.f32 %v864, %v1076
        %v1141 = vadd.f32 %v869, %v1077
        %v1142 = vadd.f32 %v872, %v1078
        %v1143 = vadd.f32 %v877, %v1079
        %v1144 = vadd.f32 %v880, %v1080
        %v1145 = vadd.f32 %v885, %v1081
        %v1146 = vadd.f32 %v888, %v1082
        %v1147 = vmul.f32 %v1083, 0.7978846
        %v1148 = vmul.f32 %v1084, 0.7978846
        %v1149 = vmul.f32 %v1085, 0.7978846
        %v1150 = vmul.f32 %v1086, 0.7978846
        %v1151 = vmul.f32 %v1087, 0.7978846
        %v1152 = vmul.f32 %v1088, 0.7978846
        %v1153 = vmul.f32 %v1089, 0.7978846
        %v1154 = vmul.f32 %v1090, 0.7978846
        %v1155 = vmul.f32 %v1091, 0.7978846
        %v1156 = vmul.f32 %v1092, 0.7978846
        %v1157 = vmul.f32 %v1093, 0.7978846
        %v1158 = vmul.f32 %v1094, 0.7978846
        %v1159 = vmul.f32 %v1095, 0.7978846
        %v1160 = vmul.f32 %v1096, 0.7978846
        %v1161 = vmul.f32 %v1097, 0.7978846
        %v1162 = vmul.f32 %v1098, 0.7978846
        %v1163 = vmul.f32 %v1099, 0.7978846
        %v1164 = vmul.f32 %v1100, 0.7978846
        %v1165 = vmul.f32 %v1101, 0.7978846
        %v1166 = vmul.f32 %v1102, 0.7978846
        %v1167 = vmul.f32 %v1103, 0.7978846
        %v1168 = vmul.f32 %v1104, 0.7978846
        %v1169 = vmul.f32 %v1105, 0.7978846
        %v1170 = vmul.f32 %v1106, 0.7978846
        %v1171 = vmul.f32 %v1107, 0.7978846
        %v1172 = vmul.f32 %v1108, 0.7978846
        %v1173 = vmul.f32 %v1109, 0.7978846
        %v1174 = vmul.f32 %v1110, 0.7978846
        %v1175 = vmul.f32 %v1111, 0.7978846
        %v1176 = vmul.f32 %v1112, 0.7978846
        %v1177 = vmul.f32 %v1113, 0.7978846
        %v1178 = vmul.f32 %v1114, 0.7978846
        %v1179 = vmul.f32 %v1115, 0.7978846
        %v1180 = vmul.f32 %v1116, 0.7978846
        %v1181 = vmul.f32 %v1117, 0.7978846
        %v1182 = vmul.f32 %v1118, 0.7978846
        %v1183 = vmul.f32 %v1119, 0.7978846
        %v1184 = vmul.f32 %v1120, 0.7978846
        %v1185 = vmul.f32 %v1121, 0.7978846
        %v1186 = vmul.f32 %v1122, 0.7978846
        %v1187 = vmul.f32 %v1123, 0.7978846
        %v1188 = vmul.f32 %v1124, 0.7978846
        %v1189 = vmul.f32 %v1125, 0.7978846
        %v1190 = vmul.f32 %v1126, 0.7978846
        %v1191 = vmul.f32 %v1127, 0.7978846
        %v1192 = vmul.f32 %v1128, 0.7978846
        %v1193 = vmul.f32 %v1129, 0.7978846
        %v1194 = vmul.f32 %v1130, 0.7978846
        %v1195 = vmul.f32 %v1131, 0.7978846
        %v1196 = vmul.f32 %v1132, 0.7978846
        %v1197 = vmul.f32 %v1133, 0.7978846
        %v1198 = vmul.f32 %v1134, 0.7978846
        %v1199 = vmul.f32 %v1135, 0.7978846
        %v1200 = vmul.f32 %v1136, 0.7978846
        %v1201 = vmul.f32 %v1137, 0.7978846
        %v1202 = vmul.f32 %v1138, 0.7978846
        %v1203 = vmul.f32 %v1139, 0.7978846
        %v1204 = vmul.f32 %v1140, 0.7978846
        %v1205 = vmul.f32 %v1141, 0.7978846
        %v1206 = vmul.f32 %v1142, 0.7978846
        %v1207 = vmul.f32 %v1143, 0.7978846
        %v1208 = vmul.f32 %v1144, 0.7978846
        %v1209 = vmul.f32 %v1145, 0.7978846
        %v1210 = vmul.f32 %v1146, 0.7978846
        %v1211 = vtanh.pop %v1147
        %v1212 = vtanh.pop %v1148
        %v1213 = vtanh.pop %v1149
        %v1214 = vtanh.pop %v1150
        %v1215 = vtanh.pop %v1151
        %v1216 = vtanh.pop %v1152
        %v1217 = vtanh.pop %v1153
        %v1218 = vtanh.pop %v1154
        %v1219 = vtanh.pop %v1155
        %v1220 = vtanh.pop %v1156
        %v1221 = vtanh.pop %v1157
        %v1222 = vtanh.pop %v1158
        %v1223 = vtanh.pop %v1159
        %v1224 = vtanh.pop %v1160
        %v1225 = vtanh.pop %v1161
        %v1226 = vtanh.pop %v1162
        %v1227 = vtanh.pop %v1163
        %v1228 = vtanh.pop %v1164
        %v1229 = vtanh.pop %v1165
        %v1230 = vtanh.pop %v1166
        %v1231 = vtanh.pop %v1167
        %v1232 = vtanh.pop %v1168
        %v1233 = vtanh.pop %v1169
        %v1234 = vtanh.pop %v1170
        %v1235 = vtanh.pop %v1171
        %v1236 = vtanh.pop %v1172
        %v1237 = vtanh.pop %v1173
        %v1238 = vtanh.pop %v1174
        %v1239 = vtanh.pop %v1175
        %v1240 = vtanh.pop %v1176
        %v1241 = vtanh.pop %v1177
        %v1242 = vtanh.pop %v1178
        %v1243 = vtanh.pop %v1179
        %v1244 = vtanh.pop %v1180
        %v1245 = vtanh.pop %v1181
        %v1246 = vtanh.pop %v1182
        %v1247 = vtanh.pop %v1183
        %v1248 = vtanh.pop %v1184
        %v1249 = vtanh.pop %v1185
        %v1250 = vtanh.pop %v1186
        %v1251 = vtanh.pop %v1187
        %v1252 = vtanh.pop %v1188
        %v1253 = vtanh.pop %v1189
        %v1254 = vtanh.pop %v1190
        %v1255 = vtanh.pop %v1191
        %v1256 = vtanh.pop %v1192
        %v1257 = vtanh.pop %v1193
        %v1258 = vtanh.pop %v1194
        %v1259 = vtanh.pop %v1195
        %v1260 = vtanh.pop %v1196
        %v1261 = vtanh.pop %v1197
        %v1262 = vtanh.pop %v1198
        %v1263 = vtanh.pop %v1199
        %v1264 = vtanh.pop %v1200
        %v1265 = vtanh.pop %v1201
        %v1266 = vtanh.pop %v1202
        %v1267 = vtanh.pop %v1203
        %v1268 = vtanh.pop %v1204
        %v1269 = vtanh.pop %v1205
        %v1270 = vtanh.pop %v1206
        %v1271 = vtanh.pop %v1207
        %v1272 = vtanh.pop %v1208
        %v1273 = vtanh.pop %v1209
        %v1274 = vtanh.pop %v1210
        %v1275 = vadd.f32 %v1211, 1.0
        %v1276 = vadd.f32 %v1212, 1.0
        %v1277 = vadd.f32 %v1213, 1.0
        %v1278 = vadd.f32 %v1214, 1.0
        %v1279 = vadd.f32 %v1215, 1.0
        %v1280 = vadd.f32 %v1216, 1.0
        %v1281 = vadd.f32 %v1217, 1.0
        %v1282 = vadd.f32 %v1218, 1.0
        %v1283 = vadd.f32 %v1219, 1.0
        %v1284 = vadd.f32 %v1220, 1.0
        %v1285 = vadd.f32 %v1221, 1.0
        %v1286 = vadd.f32 %v1222, 1.0
        %v1287 = vadd.f32 %v1223, 1.0
        %v1288 = vadd.f32 %v1224, 1.0
        %v1289 = vadd.f32 %v1225, 1.0
        %v1290 = vadd.f32 %v1226, 1.0
        %v1291 = vadd.f32 %v1227, 1.0
        %v1292 = vadd.f32 %v1228, 1.0
        %v1293 = vadd.f32 %v1229, 1.0
        %v1294 = vadd.f32 %v1230, 1.0
        %v1295 = vadd.f32 %v1231, 1.0
        %v1296 = vadd.f32 %v1232, 1.0
        %v1297 = vadd.f32 %v1233, 1.0
        %v1298 = vadd.f32 %v1234, 1.0
        %v1299 = vadd.f32 %v1235, 1.0
        %v1300 = vadd.f32 %v1236, 1.0
        %v1301 = vadd.f32 %v1237, 1.0
        %v1302 = vadd.f32 %v1238, 1.0
        %v1303 = vadd.f32 %v1239, 1.0
        %v1304 = vadd.f32 %v1240, 1.0
        %v1305 = vadd.f32 %v1241, 1.0
        %v1306 = vadd.f32 %v1242, 1.0
        %v1307 = vadd.f32 %v1243, 1.0
        %v1308 = vadd.f32 %v1244, 1.0
        %v1309 = vadd.f32 %v1245, 1.0
        %v1310 = vadd.f32 %v1246, 1.0
        %v1311 = vadd.f32 %v1247, 1.0
        %v1312 = vadd.f32 %v1248, 1.0
        %v1313 = vadd.f32 %v1249, 1.0
        %v1314 = vadd.f32 %v1250, 1.0
        %v1315 = vadd.f32 %v1251, 1.0
        %v1316 = vadd.f32 %v1252, 1.0
        %v1317 = vadd.f32 %v1253, 1.0
        %v1318 = vadd.f32 %v1254, 1.0
        %v1319 = vadd.f32 %v1255, 1.0
        %v1320 = vadd.f32 %v1256, 1.0
        %v1321 = vadd.f32 %v1257, 1.0
        %v1322 = vadd.f32 %v1258, 1.0
        %v1323 = vadd.f32 %v1259, 1.0
        %v1324 = vadd.f32 %v1260, 1.0
        %v1325 = vadd.f32 %v1261, 1.0
        %v1326 = vadd.f32 %v1262, 1.0
        %v1327 = vadd.f32 %v1263, 1.0
        %v1328 = vadd.f32 %v1264, 1.0
        %v1329 = vadd.f32 %v1265, 1.0
        %v1330 = vadd.f32 %v1266, 1.0
        %v1331 = vadd.f32 %v1267, 1.0
        %v1332 = vadd.f32 %v1268, 1.0
        %v1333 = vadd.f32 %v1269, 1.0
        %v1334 = vadd.f32 %v1270, 1.0
        %v1335 = vadd.f32 %v1271, 1.0
        %v1336 = vadd.f32 %v1272, 1.0
        %v1337 = vadd.f32 %v1273, 1.0
        %v1338 = vadd.f32 %v1274, 1.0
        %v1339 = vmul.f32 %v1275, 0.5
        %v1340 = vmul.f32 %v1276, 0.5
        %v1341 = vmul.f32 %v1277, 0.5
        %v1342 = vmul.f32 %v1278, 0.5
        %v1343 = vmul.f32 %v1279, 0.5
        %v1344 = vmul.f32 %v1280, 0.5
        %v1345 = vmul.f32 %v1281, 0.5
        %v1346 = vmul.f32 %v1282, 0.5
        %v1347 = vmul.f32 %v1283, 0.5
        %v1348 = vmul.f32 %v1284, 0.5
        %v1349 = vmul.f32 %v1285, 0.5
        %v1350 = vmul.f32 %v1286, 0.5
        %v1351 = vmul.f32 %v1287, 0.5
        %v1352 = vmul.f32 %v1288, 0.5
        %v1353 = vmul.f32 %v1289, 0.5
        %v1354 = vmul.f32 %v1290, 0.5
        %v1355 = vmul.f32 %v1291, 0.5
        %v1356 = vmul.f32 %v1292, 0.5
        %v1357 = vmul.f32 %v1293, 0.5
        %v1358 = vmul.f32 %v1294, 0.5
        %v1359 = vmul.f32 %v1295, 0.5
        %v1360 = vmul.f32 %v1296, 0.5
        %v1361 = vmul.f32 %v1297, 0.5
        %v1362 = vmul.f32 %v1298, 0.5
        %v1363 = vmul.f32 %v1299, 0.5
        %v1364 = vmul.f32 %v1300, 0.5
        %v1365 = vmul.f32 %v1301, 0.5
        %v1366 = vmul.f32 %v1302, 0.5
        %v1367 = vmul.f32 %v1303, 0.5
        %v1368 = vmul.f32 %v1304, 0.5
        %v1369 = vmul.f32 %v1305, 0.5
        %v1370 = vmul.f32 %v1306, 0.5
        %v1371 = vmul.f32 %v1307, 0.5
        %v1372 = vmul.f32 %v1308, 0.5
        %v1373 = vmul.f32 %v1309, 0.5
        %v1374 = vmul.f32 %v1310, 0.5
        %v1375 = vmul.f32 %v1311, 0.5
        %v1376 = vmul.f32 %v1312, 0.5
        %v1377 = vmul.f32 %v1313, 0.5
        %v1378 = vmul.f32 %v1314, 0.5
        %v1379 = vmul.f32 %v1315, 0.5
        %v1380 = vmul.f32 %v1316, 0.5
        %v1381 = vmul.f32 %v1317, 0.5
        %v1382 = vmul.f32 %v1318, 0.5
        %v1383 = vmul.f32 %v1319, 0.5
        %v1384 = vmul.f32 %v1320, 0.5
        %v1385 = vmul.f32 %v1321, 0.5
        %v1386 = vmul.f32 %v1322, 0.5
        %v1387 = vmul.f32 %v1323, 0.5
        %v1388 = vmul.f32 %v1324, 0.5
        %v1389 = vmul.f32 %v1325, 0.5
        %v1390 = vmul.f32 %v1326, 0.5
        %v1391 = vmul.f32 %v1327, 0.5
        %v1392 = vmul.f32 %v1328, 0.5
        %v1393 = vmul.f32 %v1329, 0.5
        %v1394 = vmul.f32 %v1330, 0.5
        %v1395 = vmul.f32 %v1331, 0.5
        %v1396 = vmul.f32 %v1332, 0.5
        %v1397 = vmul.f32 %v1333, 0.5
        %v1398 = vmul.f32 %v1334, 0.5
        %v1399 = vmul.f32 %v1335, 0.5
        %v1400 = vmul.f32 %v1336, 0.5
        %v1401 = vmul.f32 %v1337, 0.5
        %v1402 = vmul.f32 %v1338, 0.5
        %v1403 = vmul.f32 %v637, %v1339
        %v1404 = vmul.f32 %v640, %v1340
        %v1405 = vmul.f32 %v645, %v1341
        %v1406 = vmul.f32 %v648, %v1342
        %v1407 = vmul.f32 %v653, %v1343
        %v1408 = vmul.f32 %v656, %v1344
        %v1409 = vmul.f32 %v661, %v1345
        %v1410 = vmul.f32 %v664, %v1346
        %v1411 = vmul.f32 %v669, %v1347
        %v1412 = vmul.f32 %v672, %v1348
        %v1413 = vmul.f32 %v677, %v1349
        %v1414 = vmul.f32 %v680, %v1350
        %v1415 = vmul.f32 %v685, %v1351
        %v1416 = vmul.f32 %v688, %v1352
        %v1417 = vmul.f32 %v693, %v1353
        %v1418 = vmul.f32 %v696, %v1354
        %v1419 = vmul.f32 %v701, %v1355
        %v1420 = vmul.f32 %v704, %v1356
        %v1421 = vmul.f32 %v709, %v1357
        %v1422 = vmul.f32 %v712, %v1358
        %v1423 = vmul.f32 %v717, %v1359
        %v1424 = vmul.f32 %v720, %v1360
        %v1425 = vmul.f32 %v725, %v1361
        %v1426 = vmul.f32 %v728, %v1362
        %v1427 = vmul.f32 %v733, %v1363
        %v1428 = vmul.f32 %v736, %v1364
        %v1429 = vmul.f32 %v741, %v1365
        %v1430 = vmul.f32 %v744, %v1366
        %v1431 = vmul.f32 %v749, %v1367
        %v1432 = vmul.f32 %v752, %v1368
        %v1433 = vmul.f32 %v757, %v1369
        %v1434 = vmul.f32 %v760, %v1370
        %v1435 = vmul.f32 %v765, %v1371
        %v1436 = vmul.f32 %v768, %v1372
        %v1437 = vmul.f32 %v773, %v1373
        %v1438 = vmul.f32 %v776, %v1374
        %v1439 = vmul.f32 %v781, %v1375
        %v1440 = vmul.f32 %v784, %v1376
        %v1441 = vmul.f32 %v789, %v1377
        %v1442 = vmul.f32 %v792, %v1378
        %v1443 = vmul.f32 %v797, %v1379
        %v1444 = vmul.f32 %v800, %v1380
        %v1445 = vmul.f32 %v805, %v1381
        %v1446 = vmul.f32 %v808, %v1382
        %v1447 = vmul.f32 %v813, %v1383
        %v1448 = vmul.f32 %v816, %v1384
        %v1449 = vmul.f32 %v821, %v1385
        %v1450 = vmul.f32 %v824, %v1386
        %v1451 = vmul.f32 %v829, %v1387
        %v1452 = vmul.f32 %v832, %v1388
        %v1453 = vmul.f32 %v837, %v1389
        %v1454 = vmul.f32 %v840, %v1390
        %v1455 = vmul.f32 %v845, %v1391
        %v1456 = vmul.f32 %v848, %v1392
        %v1457 = vmul.f32 %v853, %v1393
        %v1458 = vmul.f32 %v856, %v1394
        %v1459 = vmul.f32 %v861, %v1395
        %v1460 = vmul.f32 %v864, %v1396
        %v1461 = vmul.f32 %v869, %v1397
        %v1462 = vmul.f32 %v872, %v1398
        %v1463 = vmul.f32 %v877, %v1399
        %v1464 = vmul.f32 %v880, %v1400
        %v1465 = vmul.f32 %v885, %v1401
        %v1466 = vmul.f32 %v888, %v1402
        %v1467 = vld [vmem:[#allocation7] sm:$0xff]
        %v1468 = vld [vmem:[#allocation7 + $0x8] sm:$0xff]
        %v1469 = vld [vmem:[#allocation7 + $0x10] sm:$0xff]
        %v1470 = vld [vmem:[#allocation7 + $0x18] sm:$0xff]
        %v1471 = vld [vmem:[#allocation7 + $0x20] sm:$0xff]
        %v1472 = vld [vmem:[#allocation7 + $0x28] sm:$0xff]
        %v1473 = vld [vmem:[#allocation7 + $0x30] sm:$0xff]
        %v1474 = vld [vmem:[#allocation7 + $0x38] sm:$0xff]
        %v1475 = vld [vmem:[#allocation7 + $0x40] sm:$0xff]
        %v1476 = vld [vmem:[#allocation7 + $0x48] sm:$0xff]
        %v1477 = vld [vmem:[#allocation7 + $0x50] sm:$0xff]
        %v1478 = vld [vmem:[#allocation7 + $0x58] sm:$0xff]
        %v1479 = vld [vmem:[#allocation7 + $0x60] sm:$0xff]
        %v1480 = vld [vmem:[#allocation7 + $0x68] sm:$0xff]
        %v1481 = vld [vmem:[#allocation7 + $0x70] sm:$0xff]
        %v1482 = vld [vmem:[#allocation7 + $0x78] sm:$0xff]
        %v1483 = vld [vmem:[%s4] sm:$0x1]
        %v1485 = vlaneseq
        %v1486 = vshrl.u32 %v1485, 7
        %v1487 = vsub.s32 0, %v1486
        %v1488 = vrot.slane %v1483, %v1487
        %1490 = vmatprep.subr.mxu0 0.0
        %1491 = vmatpush1.msra.mxu0 %v1482
        %1492 = vmatprep.subr.mxu0 0.0
        %1493 = vmatpush1.msra.mxu0 %v1481
        %1494 = vmatprep.subr.mxu0 0.0
        %1495 = vmatpush1.msra.mxu0 %v1480
        %1496 = vmatprep.subr.mxu0 0.0
        %1497 = vmatpush1.msra.mxu0 %v1479
        %1498 = vmatprep.subr.mxu0 0.0
        %1499 = vmatpush1.msra.mxu0 %v1478
        %1500 = vmatprep.subr.mxu0 0.0
        %1501 = vmatpush1.msra.mxu0 %v1477
        %1502 = vmatprep.subr.mxu0 0.0
        %1503 = vmatpush1.msra.mxu0 %v1476
        %1504 = vmatprep.subr.mxu0 0.0
        %1505 = vmatpush1.msra.mxu0 %v1475
        %1506 = vmatprep.subr.mxu0 0.0
        %1507 = vmatpush1.msra.mxu0 %v1474
        %1508 = vmatprep.subr.mxu0 0.0
        %1509 = vmatpush1.msra.mxu0 %v1473
        %1510 = vmatprep.subr.mxu0 0.0
        %1511 = vmatpush1.msra.mxu0 %v1472
        %1512 = vmatprep.subr.mxu0 0.0
        %1513 = vmatpush1.msra.mxu0 %v1471
        %1514 = vmatprep.subr.mxu0 0.0
        %1515 = vmatpush1.msra.mxu0 %v1470
        %1516 = vmatprep.subr.mxu0 0.0
        %1517 = vmatpush1.msra.mxu0 %v1469
        %1518 = vmatprep.subr.mxu0 0.0
        %1519 = vmatpush1.msra.mxu0 %v1468
        %1520 = vmatprep.subr.mxu0 0.0
        %1521 = vmatpush1.msra.mxu0 %v1467
        %1522 = vmatprep.subr.mxu0 0.0
        %1523 = vmatpush2.msra.mxu0 0.0
        %1524 = vmatprep.subr.mxu0 0.0
        %1525 = vmatpush2.msra.mxu0 0.0
        %1526 = vmatprep.subr.mxu0 0.0
        %1527 = vmatpush2.msra.mxu0 0.0
        %1528 = vmatprep.subr.mxu0 0.0
        %1529 = vmatpush2.msra.mxu0 0.0
        %1530 = vmatprep.subr.mxu0 0.0
        %1531 = vmatpush2.msra.mxu0 0.0
        %1532 = vmatprep.subr.mxu0 0.0
        %1533 = vmatpush2.msra.mxu0 0.0
        %1534 = vmatprep.subr.mxu0 0.0
        %1535 = vmatpush2.msra.mxu0 0.0
        %1536 = vmatprep.subr.mxu0 0.0
        %1537 = vmatpush2.msra.mxu0 0.0
        %1538 = vmatprep.subr.mxu0 0.0
        %1539 = vmatpush2.msra.mxu0 0.0
        %1540 = vmatprep.subr.mxu0 0.0
        %1541 = vmatpush2.msra.mxu0 0.0
        %1542 = vmatprep.subr.mxu0 0.0
        %1543 = vmatpush2.msra.mxu0 0.0
        %1544 = vmatprep.subr.mxu0 0.0
        %1545 = vmatpush2.msra.mxu0 0.0
        %1546 = vmatprep.subr.mxu0 0.0
        %1547 = vmatpush2.msra.mxu0 0.0
        %1548 = vmatprep.subr.mxu0 0.0
        %1549 = vmatpush2.msra.mxu0 0.0
        %1550 = vmatprep.subr.mxu0 0.0
        %1551 = vmatpush2.msra.mxu0 0.0
        %1552 = vmatprep.subr.mxu0 0.0
        %1553 = vmatpush2.msra.mxu0 0.0
        %1554 = vmatprep.mubr.f32.mxu0 0.0
        %1555 = vmatmul.mubr.f32.gmra.mxu0 %v1403
        %v1556 = vpop.f32.mrf.mxu0
        %v1557 = vadd.f32 %v1488, %v1556
        %v1558 = vpop.f32.mrf.mxu0
        %1559 = vmatprep.mubr.f32.mxu0 0.0
        %1560 = vmatmul.mubr.f32.gmra.mxu0 %v1404
        %v1561 = vpop.f32.mrf.mxu0
        %v1562 = vadd.f32 %v1488, %v1561
        %v1563 = vpop.f32.mrf.mxu0
        %1564 = vmatprep.mubr.f32.mxu0 0.0
        %1565 = vmatmul.mubr.f32.gmra.mxu0 %v1405
        %v1566 = vpop.f32.mrf.mxu0
        %v1567 = vadd.f32 %v1488, %v1566
        %v1568 = vpop.f32.mrf.mxu0
        %1569 = vmatprep.mubr.f32.mxu0 0.0
        %1570 = vmatmul.mubr.f32.gmra.mxu0 %v1406
        %v1571 = vpop.f32.mrf.mxu0
        %v1572 = vadd.f32 %v1488, %v1571
        %v1573 = vpop.f32.mrf.mxu0
        %1574 = vmatprep.mubr.f32.mxu0 0.0
        %1575 = vmatmul.mubr.f32.gmra.mxu0 %v1407
        %v1576 = vpop.f32.mrf.mxu0
        %v1577 = vadd.f32 %v1488, %v1576
        %v1578 = vpop.f32.mrf.mxu0
        %1579 = vmatprep.mubr.f32.mxu0 0.0
        %1580 = vmatmul.mubr.f32.gmra.mxu0 %v1408
        %v1581 = vpop.f32.mrf.mxu0
        %v1582 = vadd.f32 %v1488, %v1581
        %v1583 = vpop.f32.mrf.mxu0
        %1584 = vmatprep.mubr.f32.mxu0 0.0
        %1585 = vmatmul.mubr.f32.gmra.mxu0 %v1409
        %v1586 = vpop.f32.mrf.mxu0
        %v1587 = vadd.f32 %v1488, %v1586
        %v1588 = vpop.f32.mrf.mxu0
        %1589 = vmatprep.mubr.f32.mxu0 0.0
        %1590 = vmatmul.mubr.f32.gmra.mxu0 %v1410
        %v1591 = vpop.f32.mrf.mxu0
        %v1592 = vadd.f32 %v1488, %v1591
        %v1593 = vpop.f32.mrf.mxu0
        %1594 = vmatprep.mubr.f32.mxu0 0.0
        %1595 = vmatmul.mubr.f32.gmra.mxu0 %v1411
        %v1596 = vpop.f32.mrf.mxu0
        %v1597 = vadd.f32 %v1488, %v1596
        %v1598 = vpop.f32.mrf.mxu0
        %1599 = vmatprep.mubr.f32.mxu0 0.0
        %1600 = vmatmul.mubr.f32.gmra.mxu0 %v1412
        %v1601 = vpop.f32.mrf.mxu0
        %v1602 = vadd.f32 %v1488, %v1601
        %v1603 = vpop.f32.mrf.mxu0
        %1604 = vmatprep.mubr.f32.mxu0 0.0
        %1605 = vmatmul.mubr.f32.gmra.mxu0 %v1413
        %v1606 = vpop.f32.mrf.mxu0
        %v1607 = vadd.f32 %v1488, %v1606
        %v1608 = vpop.f32.mrf.mxu0
        %1609 = vmatprep.mubr.f32.mxu0 0.0
        %1610 = vmatmul.mubr.f32.gmra.mxu0 %v1414
        %v1611 = vpop.f32.mrf.mxu0
        %v1612 = vadd.f32 %v1488, %v1611
        %v1613 = vpop.f32.mrf.mxu0
        %1614 = vmatprep.mubr.f32.mxu0 0.0
        %1615 = vmatmul.mubr.f32.gmra.mxu0 %v1415
        %v1616 = vpop.f32.mrf.mxu0
        %v1617 = vadd.f32 %v1488, %v1616
        %v1618 = vpop.f32.mrf.mxu0
        %1619 = vmatprep.mubr.f32.mxu0 0.0
        %1620 = vmatmul.mubr.f32.gmra.mxu0 %v1416
        %v1621 = vpop.f32.mrf.mxu0
        %v1622 = vadd.f32 %v1488, %v1621
        %v1623 = vpop.f32.mrf.mxu0
        %1624 = vmatprep.mubr.f32.mxu0 0.0
        %1625 = vmatmul.mubr.f32.gmra.mxu0 %v1417
        %v1626 = vpop.f32.mrf.mxu0
        %v1627 = vadd.f32 %v1488, %v1626
        %v1628 = vpop.f32.mrf.mxu0
        %1629 = vmatprep.mubr.f32.mxu0 0.0
        %1630 = vmatmul.mubr.f32.gmra.mxu0 %v1418
        %v1631 = vpop.f32.mrf.mxu0
        %v1632 = vadd.f32 %v1488, %v1631
        %v1633 = vpop.f32.mrf.mxu0
        %1634 = vmatprep.mubr.f32.mxu0 0.0
        %1635 = vmatmul.mubr.f32.gmra.mxu0 %v1419
        %v1636 = vpop.f32.mrf.mxu0
        %v1637 = vadd.f32 %v1488, %v1636
        %v1638 = vpop.f32.mrf.mxu0
        %1639 = vmatprep.mubr.f32.mxu0 0.0
        %1640 = vmatmul.mubr.f32.gmra.mxu0 %v1420
        %v1641 = vpop.f32.mrf.mxu0
        %v1642 = vadd.f32 %v1488, %v1641
        %v1643 = vpop.f32.mrf.mxu0
        %1644 = vmatprep.mubr.f32.mxu0 0.0
        %1645 = vmatmul.mubr.f32.gmra.mxu0 %v1421
        %v1646 = vpop.f32.mrf.mxu0
        %v1647 = vadd.f32 %v1488, %v1646
        %v1648 = vpop.f32.mrf.mxu0
        %1649 = vmatprep.mubr.f32.mxu0 0.0
        %1650 = vmatmul.mubr.f32.gmra.mxu0 %v1422
        %v1651 = vpop.f32.mrf.mxu0
        %v1652 = vadd.f32 %v1488, %v1651
        %v1653 = vpop.f32.mrf.mxu0
        %1654 = vmatprep.mubr.f32.mxu0 0.0
        %1655 = vmatmul.mubr.f32.gmra.mxu0 %v1423
        %v1656 = vpop.f32.mrf.mxu0
        %v1657 = vadd.f32 %v1488, %v1656
        %v1658 = vpop.f32.mrf.mxu0
        %1659 = vmatprep.mubr.f32.mxu0 0.0
        %1660 = vmatmul.mubr.f32.gmra.mxu0 %v1424
        %v1661 = vpop.f32.mrf.mxu0
        %v1662 = vadd.f32 %v1488, %v1661
        %v1663 = vpop.f32.mrf.mxu0
        %1664 = vmatprep.mubr.f32.mxu0 0.0
        %1665 = vmatmul.mubr.f32.gmra.mxu0 %v1425
        %v1666 = vpop.f32.mrf.mxu0
        %v1667 = vadd.f32 %v1488, %v1666
        %v1668 = vpop.f32.mrf.mxu0
        %1669 = vmatprep.mubr.f32.mxu0 0.0
        %1670 = vmatmul.mubr.f32.gmra.mxu0 %v1426
        %v1671 = vpop.f32.mrf.mxu0
        %v1672 = vadd.f32 %v1488, %v1671
        %v1673 = vpop.f32.mrf.mxu0
        %1674 = vmatprep.mubr.f32.mxu0 0.0
        %1675 = vmatmul.mubr.f32.gmra.mxu0 %v1427
        %v1676 = vpop.f32.mrf.mxu0
        %v1677 = vadd.f32 %v1488, %v1676
        %v1678 = vpop.f32.mrf.mxu0
        %1679 = vmatprep.mubr.f32.mxu0 0.0
        %1680 = vmatmul.mubr.f32.gmra.mxu0 %v1428
        %v1681 = vpop.f32.mrf.mxu0
        %v1682 = vadd.f32 %v1488, %v1681
        %v1683 = vpop.f32.mrf.mxu0
        %1684 = vmatprep.mubr.f32.mxu0 0.0
        %1685 = vmatmul.mubr.f32.gmra.mxu0 %v1429
        %v1686 = vpop.f32.mrf.mxu0
        %v1687 = vadd.f32 %v1488, %v1686
        %v1688 = vpop.f32.mrf.mxu0
        %1689 = vmatprep.mubr.f32.mxu0 0.0
        %1690 = vmatmul.mubr.f32.gmra.mxu0 %v1430
        %v1691 = vpop.f32.mrf.mxu0
        %v1692 = vadd.f32 %v1488, %v1691
        %v1693 = vpop.f32.mrf.mxu0
        %1694 = vmatprep.mubr.f32.mxu0 0.0
        %1695 = vmatmul.mubr.f32.gmra.mxu0 %v1431
        %v1696 = vpop.f32.mrf.mxu0
        %v1697 = vadd.f32 %v1488, %v1696
        %v1698 = vpop.f32.mrf.mxu0
        %1699 = vmatprep.mubr.f32.mxu0 0.0
        %1700 = vmatmul.mubr.f32.gmra.mxu0 %v1432
        %v1701 = vpop.f32.mrf.mxu0
        %v1702 = vadd.f32 %v1488, %v1701
        %v1703 = vpop.f32.mrf.mxu0
        %1704 = vmatprep.mubr.f32.mxu0 0.0
        %1705 = vmatmul.mubr.f32.gmra.mxu0 %v1433
        %v1706 = vpop.f32.mrf.mxu0
        %v1707 = vadd.f32 %v1488, %v1706
        %v1708 = vpop.f32.mrf.mxu0
        %1709 = vmatprep.mubr.f32.mxu0 0.0
        %1710 = vmatmul.mubr.f32.gmra.mxu0 %v1434
        %v1711 = vpop.f32.mrf.mxu0
        %v1712 = vadd.f32 %v1488, %v1711
        %v1713 = vpop.f32.mrf.mxu0
        %1714 = vmatprep.mubr.f32.mxu0 0.0
        %1715 = vmatmul.mubr.f32.gmra.mxu0 %v1435
        %v1716 = vpop.f32.mrf.mxu0
        %v1717 = vadd.f32 %v1488, %v1716
        %v1718 = vpop.f32.mrf.mxu0
        %1719 = vmatprep.mubr.f32.mxu0 0.0
        %1720 = vmatmul.mubr.f32.gmra.mxu0 %v1436
        %v1721 = vpop.f32.mrf.mxu0
        %v1722 = vadd.f32 %v1488, %v1721
        %v1723 = vpop.f32.mrf.mxu0
        %1724 = vmatprep.mubr.f32.mxu0 0.0
        %1725 = vmatmul.mubr.f32.gmra.mxu0 %v1437
        %v1726 = vpop.f32.mrf.mxu0
        %v1727 = vadd.f32 %v1488, %v1726
        %v1728 = vpop.f32.mrf.mxu0
        %1729 = vmatprep.mubr.f32.mxu0 0.0
        %1730 = vmatmul.mubr.f32.gmra.mxu0 %v1438
        %v1731 = vpop.f32.mrf.mxu0
        %v1732 = vadd.f32 %v1488, %v1731
        %v1733 = vpop.f32.mrf.mxu0
        %1734 = vmatprep.mubr.f32.mxu0 0.0
        %1735 = vmatmul.mubr.f32.gmra.mxu0 %v1439
        %v1736 = vpop.f32.mrf.mxu0
        %v1737 = vadd.f32 %v1488, %v1736
        %v1738 = vpop.f32.mrf.mxu0
        %1739 = vmatprep.mubr.f32.mxu0 0.0
        %1740 = vmatmul.mubr.f32.gmra.mxu0 %v1440
        %v1741 = vpop.f32.mrf.mxu0
        %v1742 = vadd.f32 %v1488, %v1741
        %v1743 = vpop.f32.mrf.mxu0
        %1744 = vmatprep.mubr.f32.mxu0 0.0
        %1745 = vmatmul.mubr.f32.gmra.mxu0 %v1441
        %v1746 = vpop.f32.mrf.mxu0
        %v1747 = vadd.f32 %v1488, %v1746
        %v1748 = vpop.f32.mrf.mxu0
        %1749 = vmatprep.mubr.f32.mxu0 0.0
        %1750 = vmatmul.mubr.f32.gmra.mxu0 %v1442
        %v1751 = vpop.f32.mrf.mxu0
        %v1752 = vadd.f32 %v1488, %v1751
        %v1753 = vpop.f32.mrf.mxu0
        %1754 = vmatprep.mubr.f32.mxu0 0.0
        %1755 = vmatmul.mubr.f32.gmra.mxu0 %v1443
        %v1756 = vpop.f32.mrf.mxu0
        %v1757 = vadd.f32 %v1488, %v1756
        %v1758 = vpop.f32.mrf.mxu0
        %1759 = vmatprep.mubr.f32.mxu0 0.0
        %1760 = vmatmul.mubr.f32.gmra.mxu0 %v1444
        %v1761 = vpop.f32.mrf.mxu0
        %v1762 = vadd.f32 %v1488, %v1761
        %v1763 = vpop.f32.mrf.mxu0
        %1764 = vmatprep.mubr.f32.mxu0 0.0
        %1765 = vmatmul.mubr.f32.gmra.mxu0 %v1445
        %v1766 = vpop.f32.mrf.mxu0
        %v1767 = vadd.f32 %v1488, %v1766
        %v1768 = vpop.f32.mrf.mxu0
        %1769 = vmatprep.mubr.f32.mxu0 0.0
        %1770 = vmatmul.mubr.f32.gmra.mxu0 %v1446
        %v1771 = vpop.f32.mrf.mxu0
        %v1772 = vadd.f32 %v1488, %v1771
        %v1773 = vpop.f32.mrf.mxu0
        %1774 = vmatprep.mubr.f32.mxu0 0.0
        %1775 = vmatmul.mubr.f32.gmra.mxu0 %v1447
        %v1776 = vpop.f32.mrf.mxu0
        %v1777 = vadd.f32 %v1488, %v1776
        %v1778 = vpop.f32.mrf.mxu0
        %1779 = vmatprep.mubr.f32.mxu0 0.0
        %1780 = vmatmul.mubr.f32.gmra.mxu0 %v1448
        %v1781 = vpop.f32.mrf.mxu0
        %v1782 = vadd.f32 %v1488, %v1781
        %v1783 = vpop.f32.mrf.mxu0
        %1784 = vmatprep.mubr.f32.mxu0 0.0
        %1785 = vmatmul.mubr.f32.gmra.mxu0 %v1449
        %v1786 = vpop.f32.mrf.mxu0
        %v1787 = vadd.f32 %v1488, %v1786
        %v1788 = vpop.f32.mrf.mxu0
        %1789 = vmatprep.mubr.f32.mxu0 0.0
        %1790 = vmatmul.mubr.f32.gmra.mxu0 %v1450
        %v1791 = vpop.f32.mrf.mxu0
        %v1792 = vadd.f32 %v1488, %v1791
        %v1793 = vpop.f32.mrf.mxu0
        %1794 = vmatprep.mubr.f32.mxu0 0.0
        %1795 = vmatmul.mubr.f32.gmra.mxu0 %v1451
        %v1796 = vpop.f32.mrf.mxu0
        %v1797 = vadd.f32 %v1488, %v1796
        %v1798 = vpop.f32.mrf.mxu0
        %1799 = vmatprep.mubr.f32.mxu0 0.0
        %1800 = vmatmul.mubr.f32.gmra.mxu0 %v1452
        %v1801 = vpop.f32.mrf.mxu0
        %v1802 = vadd.f32 %v1488, %v1801
        %v1803 = vpop.f32.mrf.mxu0
        %1804 = vmatprep.mubr.f32.mxu0 0.0
        %1805 = vmatmul.mubr.f32.gmra.mxu0 %v1453
        %v1806 = vpop.f32.mrf.mxu0
        %v1807 = vadd.f32 %v1488, %v1806
        %v1808 = vpop.f32.mrf.mxu0
        %1809 = vmatprep.mubr.f32.mxu0 0.0
        %1810 = vmatmul.mubr.f32.gmra.mxu0 %v1454
        %v1811 = vpop.f32.mrf.mxu0
        %v1812 = vadd.f32 %v1488, %v1811
        %v1813 = vpop.f32.mrf.mxu0
        %1814 = vmatprep.mubr.f32.mxu0 0.0
        %1815 = vmatmul.mubr.f32.gmra.mxu0 %v1455
        %v1816 = vpop.f32.mrf.mxu0
        %v1817 = vadd.f32 %v1488, %v1816
        %v1818 = vpop.f32.mrf.mxu0
        %1819 = vmatprep.mubr.f32.mxu0 0.0
        %1820 = vmatmul.mubr.f32.gmra.mxu0 %v1456
        %v1821 = vpop.f32.mrf.mxu0
        %v1822 = vadd.f32 %v1488, %v1821
        %v1823 = vpop.f32.mrf.mxu0
        %1824 = vmatprep.mubr.f32.mxu0 0.0
        %1825 = vmatmul.mubr.f32.gmra.mxu0 %v1457
        %v1826 = vpop.f32.mrf.mxu0
        %v1827 = vadd.f32 %v1488, %v1826
        %v1828 = vpop.f32.mrf.mxu0
        %1829 = vmatprep.mubr.f32.mxu0 0.0
        %1830 = vmatmul.mubr.f32.gmra.mxu0 %v1458
        %v1831 = vpop.f32.mrf.mxu0
        %v1832 = vadd.f32 %v1488, %v1831
        %v1833 = vpop.f32.mrf.mxu0
        %1834 = vmatprep.mubr.f32.mxu0 0.0
        %1835 = vmatmul.mubr.f32.gmra.mxu0 %v1459
        %v1836 = vpop.f32.mrf.mxu0
        %v1837 = vadd.f32 %v1488, %v1836
        %v1838 = vpop.f32.mrf.mxu0
        %1839 = vmatprep.mubr.f32.mxu0 0.0
        %1840 = vmatmul.mubr.f32.gmra.mxu0 %v1460
        %v1841 = vpop.f32.mrf.mxu0
        %v1842 = vadd.f32 %v1488, %v1841
        %v1843 = vpop.f32.mrf.mxu0
        %1844 = vmatprep.mubr.f32.mxu0 0.0
        %1845 = vmatmul.mubr.f32.gmra.mxu0 %v1461
        %v1846 = vpop.f32.mrf.mxu0
        %v1847 = vadd.f32 %v1488, %v1846
        %v1848 = vpop.f32.mrf.mxu0
        %1849 = vmatprep.mubr.f32.mxu0 0.0
        %1850 = vmatmul.mubr.f32.gmra.mxu0 %v1462
        %v1851 = vpop.f32.mrf.mxu0
        %v1852 = vadd.f32 %v1488, %v1851
        %v1853 = vpop.f32.mrf.mxu0
        %1854 = vmatprep.mubr.f32.mxu0 0.0
        %1855 = vmatmul.mubr.f32.gmra.mxu0 %v1463
        %v1856 = vpop.f32.mrf.mxu0
        %v1857 = vadd.f32 %v1488, %v1856
        %v1858 = vpop.f32.mrf.mxu0
        %1859 = vmatprep.mubr.f32.mxu0 0.0
        %1860 = vmatmul.mubr.f32.gmra.mxu0 %v1464
        %v1861 = vpop.f32.mrf.mxu0
        %v1862 = vadd.f32 %v1488, %v1861
        %v1863 = vpop.f32.mrf.mxu0
        %1864 = vmatprep.mubr.f32.mxu0 0.0
        %1865 = vmatmul.mubr.f32.gmra.mxu0 %v1465
        %v1866 = vpop.f32.mrf.mxu0
        %v1867 = vadd.f32 %v1488, %v1866
        %v1868 = vpop.f32.mrf.mxu0
        %1869 = vmatprep.mubr.f32.mxu0 0.0
        %1870 = vmatmul.mubr.f32.gmra.mxu0 %v1466
        %v1871 = vpop.f32.mrf.mxu0
        %v1872 = vadd.f32 %v1488, %v1871
        %v1873 = vpop.f32.mrf.mxu0
        %1874 = vdwg.mxu0
        %1875 = vst [vmem:[%s271] sm:$0xff] %v1557
        %1876 = vst [vmem:[%s271 + $0x8] sm:$0xff] %v1562
        %1877 = vst [vmem:[%s271 + $0x10] sm:$0xff] %v1567
        %1878 = vst [vmem:[%s271 + $0x18] sm:$0xff] %v1572
        %1879 = vst [vmem:[%s271 + $0x20] sm:$0xff] %v1577
        %1880 = vst [vmem:[%s271 + $0x28] sm:$0xff] %v1582
        %1881 = vst [vmem:[%s271 + $0x30] sm:$0xff] %v1587
        %1882 = vst [vmem:[%s271 + $0x38] sm:$0xff] %v1592
        %1883 = vst [vmem:[%s271 + $0x40] sm:$0xff] %v1597
        %1884 = vst [vmem:[%s271 + $0x48] sm:$0xff] %v1602
        %1885 = vst [vmem:[%s271 + $0x50] sm:$0xff] %v1607
        %1886 = vst [vmem:[%s271 + $0x58] sm:$0xff] %v1612
        %1887 = vst [vmem:[%s271 + $0x60] sm:$0xff] %v1617
        %1888 = vst [vmem:[%s271 + $0x68] sm:$0xff] %v1622
        %1889 = vst [vmem:[%s271 + $0x70] sm:$0xff] %v1627
        %1890 = vst [vmem:[%s271 + $0x78] sm:$0xff] %v1632
        %1891 = vst [vmem:[%s271 + $0x80] sm:$0xff] %v1637
        %1892 = vst [vmem:[%s271 + $0x88] sm:$0xff] %v1642
        %1893 = vst [vmem:[%s271 + $0x90] sm:$0xff] %v1647
        %1894 = vst [vmem:[%s271 + $0x98] sm:$0xff] %v1652
        %1895 = vst [vmem:[%s271 + $0xa0] sm:$0xff] %v1657
        %1896 = vst [vmem:[%s271 + $0xa8] sm:$0xff] %v1662
        %1897 = vst [vmem:[%s271 + $0xb0] sm:$0xff] %v1667
        %1898 = vst [vmem:[%s271 + $0xb8] sm:$0xff] %v1672
        %1899 = vst [vmem:[%s271 + $0xc0] sm:$0xff] %v1677
        %1900 = vst [vmem:[%s271 + $0xc8] sm:$0xff] %v1682
        %1901 = vst [vmem:[%s271 + $0xd0] sm:$0xff] %v1687
        %1902 = vst [vmem:[%s271 + $0xd8] sm:$0xff] %v1692
        %1903 = vst [vmem:[%s271 + $0xe0] sm:$0xff] %v1697
        %1904 = vst [vmem:[%s271 + $0xe8] sm:$0xff] %v1702
        %1905 = vst [vmem:[%s271 + $0xf0] sm:$0xff] %v1707
        %1906 = vst [vmem:[%s271 + $0xf8] sm:$0xff] %v1712
        %1907 = vst [vmem:[%s271 + $0x100] sm:$0xff] %v1717
        %1908 = vst [vmem:[%s271 + $0x108] sm:$0xff] %v1722
        %1909 = vst [vmem:[%s271 + $0x110] sm:$0xff] %v1727
        %1910 = vst [vmem:[%s271 + $0x118] sm:$0xff] %v1732
        %1911 = vst [vmem:[%s271 + $0x120] sm:$0xff] %v1737
        %1912 = vst [vmem:[%s271 + $0x128] sm:$0xff] %v1742
        %1913 = vst [vmem:[%s271 + $0x130] sm:$0xff] %v1747
        %1914 = vst [vmem:[%s271 + $0x138] sm:$0xff] %v1752
        %1915 = vst [vmem:[%s271 + $0x140] sm:$0xff] %v1757
        %1916 = vst [vmem:[%s271 + $0x148] sm:$0xff] %v1762
        %1917 = vst [vmem:[%s271 + $0x150] sm:$0xff] %v1767
        %1918 = vst [vmem:[%s271 + $0x158] sm:$0xff] %v1772
        %1919 = vst [vmem:[%s271 + $0x160] sm:$0xff] %v1777
        %1920 = vst [vmem:[%s271 + $0x168] sm:$0xff] %v1782
        %1921 = vst [vmem:[%s271 + $0x170] sm:$0xff] %v1787
        %1922 = vst [vmem:[%s271 + $0x178] sm:$0xff] %v1792
        %1923 = vst [vmem:[%s271 + $0x180] sm:$0xff] %v1797
        %1924 = vst [vmem:[%s271 + $0x188] sm:$0xff] %v1802
        %1925 = vst [vmem:[%s271 + $0x190] sm:$0xff] %v1807
        %1926 = vst [vmem:[%s271 + $0x198] sm:$0xff] %v1812
        %1927 = vst [vmem:[%s271 + $0x1a0] sm:$0xff] %v1817
        %1928 = vst [vmem:[%s271 + $0x1a8] sm:$0xff] %v1822
        %1929 = vst [vmem:[%s271 + $0x1b0] sm:$0xff] %v1827
        %1930 = vst [vmem:[%s271 + $0x1b8] sm:$0xff] %v1832
        %1931 = vst [vmem:[%s271 + $0x1c0] sm:$0xff] %v1837
        %1932 = vst [vmem:[%s271 + $0x1c8] sm:$0xff] %v1842
        %1933 = vst [vmem:[%s271 + $0x1d0] sm:$0xff] %v1847
        %1934 = vst [vmem:[%s271 + $0x1d8] sm:$0xff] %v1852
        %1935 = vst [vmem:[%s271 + $0x1e0] sm:$0xff] %v1857
        %1936 = vst [vmem:[%s271 + $0x1e8] sm:$0xff] %v1862
        %1937 = vst [vmem:[%s271 + $0x1f0] sm:$0xff] %v1867
        %1938 = vst [vmem:[%s271 + $0x1f8] sm:$0xff] %v1872
        %s1939 = sand.u32 %s141, 1
        %s1940 = scalar_lea.sflag [#allocation4], %s1939
        %s1941 = sand.u32 %s141, 1
        %s1942 = smul.addr %s1941, 512
        %s1943 = scalar_lea.vmem [#allocation8], %s1942
        // Predicated region
        $region53: #{tpu_custom_call.1} parent=39 // pred_check
          %p1944 = pneg %p151
        $region54: #{tpu_custom_call.1} parent=39 // pred_check_branch
          %1946 = sbr.rel (%p1944) target = $region56
        $region55: #{tpu_custom_call.1} parent=39 // pred_region
          %s1947 = smul.u32 64, %s23
          %s1949 = ssub.s32 8192, 8192
          %1950 = vsyncadd %s1940, %s1949
          %s1951 = smul.addr %s1947, 128
          %s1952 = scalar_lea.hbm %s5, %s1951
          %s1953 = sshll.u32 %s1943, 4
          %s1954 = int_to_ptr.vmem [resolvable:$true] %s1953
          %1959 = dma.vmem_to_hbm [thread:$0]  %s1954, 8192, %s1952, %s1940, 128, 128, 8
        $region56: #{tpu_custom_call.1} parent=39 // pred_fallthru
          _
      $region40: #{tpu_custom_call.1} parent=5 // pred_fallthru
        _
      %p1960 = scmp.le.s32.totalorder 2, %s18
      // Predicated region
      $region57: #{tpu_custom_call.1} parent=5 // pred_check
        %p1961 = pneg %p1960
      $region58: #{tpu_custom_call.1} parent=5 // pred_check_branch
        %1963 = sbr.rel (%p1961) target = $region60
      $region59: #{tpu_custom_call.1} parent=5 // pred_region
        %s1964 = ssub.s32 %s18, 2
        // Predicated region
        $region61: #{tpu_custom_call.1} parent=59 // pred_check
          %p1965 = pneg %p157
        $region62: #{tpu_custom_call.1} parent=59 // pred_check_branch
          %1967 = sbr.rel (%p1965) target = $region64
        $region63: #{tpu_custom_call.1} parent=59 // pred_region
          %s1968 = sand.u32 %s142, 1
          %s1969 = scalar_lea.sflag [#allocation4], %s1968
          %s1970 = sand.u32 %s142, 1
          %s1971 = smul.addr %s1970, 512
          %s1972 = scalar_lea.vmem [#allocation8], %s1971
          %1973 = dma.done %s1969, 8192
        $region64: #{tpu_custom_call.1} parent=59 // pred_fallthru
          _
      $region60: #{tpu_custom_call.1} parent=5 // pred_fallthru
        _
    $region6: #{tpu_custom_call.1} parent=1 // loop_footer
      %s22 = sadd.s32 1, %s18
    $region7: #{tpu_custom_call.1} parent=1 // loop_footer_branch
      %17 = sbr.rel target = $region3
    $region8: #{tpu_custom_call.1} parent=1 // loop_exit
      _
    %1974 = vsyncpa [#allocation3], 1
    %s1975 = scalar_lea.sflag [#allocation3], 1
    %1976 = vsyncpa %s1975, 1
    %1977 = vsyncpa [#allocation6], 1
    %1978 = vsyncpa [#allocation4], 1
    %s1979 = scalar_lea.sflag [#allocation4], 1
    %1980 = vsyncpa %s1979, 1

</llo_original>
